<compile_context>
chip_gen: v6e
topology: v6e:2x2x1
jax: 0.10.0
libtpu: 0.0.40
codegen_flags: <defaults>
</compile_context>

<pallas_src>
import functools

import jax
import jax.numpy as jnp
from jax import lax
from jax.experimental import pallas as pl
from jax.experimental.pallas import tpu as pltpu


def _decoder_kernel(Bt, L, K, compute_dtype,
                    x_ref, m_ref,
                    w_fc_ref, b_fc_ref,
                    w_c1_ref, b_c1_ref, w_c2_ref, b_c2_ref,
                    w_pool_ref, b_pool_ref,
                    w_m1_ref, b_m1_ref, w_m2_ref, b_m2_ref,
                    w_s1_ref, b_s1_ref, w_s2_ref, b_s2_ref,
                    out_ref):
    pad = (K - 1) // 2
    BL = Bt * L
    H = w_fc_ref.shape[-1]
    cd = compute_dtype

    def mm(a, w):
        # MXU dot: operands in compute dtype (bf16 or f32), f32 accumulation.
        return jnp.dot(a.astype(cd), w, preferred_element_type=jnp.float32)

    mask = m_ref[...]                                      # (BL, 1) f32

    # Static position-within-sequence, built fully in-kernel (no HBM input):
    # iota along the L axis of a (Bt, L, 1) shape, flattened to (BL, 1).
    pos = lax.broadcasted_iota(jnp.int32, (Bt, L, 1), 1).reshape(BL, 1)

    # fc_reduce over the whole flattened batch tile: one (BL, E)@(E, H) matmul.
    h = mm(x_ref[...], w_fc_ref[...]) + b_fc_ref[...]      # (BL, H) f32

    # dist_semantics source = fc_reduce output at sequence position 0
    # (pre-mask, exactly as in the PyTorch distinguisher).
    sem = h.reshape(Bt, L, H)[:, 0, :]                     # (Bt, H)

    # Masked ResnetBlock1d: conv -> tanh -> conv -> +identity -> tanh.
    hm = h * mask                                          # lane-broadcast mask
    identity = hm

    def conv1d(inp, w_ref, b_ref):
        # 'same' 1-D conv over the flat slab as K shifted matmuls.  pltpu.roll
        # (XLU) does the sublane shift; a static validity mask implements the
        # zero padding and stops bleed between the Bt sequences sharing the
        # flattened sublane axis.  The center tap needs neither roll nor mask.
        acc = None
        for k in range(K):
            off = k - pad                                  # source row offset
            if off == 0:
                shifted = inp
            else:
                shifted = pltpu.roll(inp, shift=(-off) % BL, axis=0)
                if off < 0:
                    valid = pos >= (-off)
                else:
                    valid = pos < (L - off)
                shifted = shifted * valid.astype(jnp.float32)
            term = mm(shifted, w_ref[k])
            acc = term if acc is None else acc + term
        return acc + b_ref[...]

    c1 = jnp.tanh(conv1d(hm, w_c1_ref, b_c1_ref))
    c2 = conv1d(c1, w_c2_ref, b_c2_ref)
    motif = jnp.tanh(identity + c2)                        # (BL, H)

    # LengthMaxPool1D(linear=True): relu(Linear(H->H)), then per-sequence max
    # as a single reshape + axis-1 reduction (matches the PyTorch module: the
    # masked rows contribute relu(b_pool) to the max, as in the reference).
    pooled_pre = jnp.maximum(
        mm(motif * mask, w_pool_ref[...]) + b_pool_ref[...], 0.0)
    pooled = jnp.max(pooled_pre.reshape(Bt, L, H), axis=1)  # (Bt, H)

    # Heads (Dropout = identity in eval mode).
    ts = jnp.tanh(mm(sem, w_s1_ref[...]) + b_s1_ref[...])
    ds = mm(ts, w_s2_ref[...]) + b_s2_ref[...]
    tm = jnp.tanh(mm(pooled, w_m1_ref[...]) + b_m1_ref[...])
    dm = mm(tm, w_m2_ref[...]) + b_m2_ref[...]

    out_ref[...] = ds + dm                                 # (Bt, 1) block


def mono_muformer_decoder(x1, x2, x1_mask, params, kernel_size=3,
                          batch_tile=None, use_bf16=True,
                          weight_buffer_count=None):
    """Pallas implementation of MonoMuformerDecoder.forward (layers=1, eval).

    batch_tile: sequences per grid step.  For production shapes size it so
      Bt*L lands in the ~512-2048 sublane range; on v7x keep B/batch_tile >= 2
      so the "parallel" grid axis shards across both TensorCores.  Default:
      whole batch in one step (grid=(1,)), right for the toy shapes.
    use_bf16: ship x and weight matrices as bf16 MXU operands (f32 accumulation
      and f32 element-wise/EUP math).  Recommended on v6e/v7x.
    weight_buffer_count: set to 1 for production (VMEM-bound) shapes to
      single-buffer the constant-index weight tiles (halves their VMEM
      residency; matters under v7x's 64 MiB physical VMEM).
    """
    del x2  # unused by the reference distinguisher (x2 / x2_mask never read)
    B, L, E = x1.shape
    H = params["w_fc"].shape[1]
    K = kernel_size
    # PyTorch Conv1d padding=(K-1)//2 is a 'same' conv only for odd K.
    assert K % 2 == 1, "kernel_size must be odd to match PyTorch 'same' conv"

    Bt = B if batch_tile is None else batch_tile
    assert B % Bt == 0, "batch_tile must divide the batch size"
    nb = B // Bt
    cdt = jnp.bfloat16 if use_bf16 else jnp.float32
    if nb > 1:
        # (8,128) rule: tiled blocks must stay sublane-aligned.
        sub = 16 if use_bf16 else 8
        assert Bt % 8 == 0 and (Bt * L) % sub == 0, (
            "batch_tile (and batch_tile*L) must be sublane-aligned when tiling")

    # Flatten batch*sequence onto the sublane axis; the mask stays a single
    # column, lane-broadcast inside the kernel (no (B, L, H) HBM array).
    x_flat = x1.reshape(B * L, E).astype(cdt)
    mask_flat = x1_mask.reshape(B * L, 1).astype(jnp.float32)

    wp = lambda name: params[name].astype(cdt)             # matmul operands
    bp = lambda name: params[name].astype(jnp.float32)     # biases stay f32

    def const_spec(shape):
        n = len(shape)
        idx = lambda i, n=n: (0,) * n
        if weight_buffer_count is None:
            return pl.BlockSpec(shape, idx)
        return pl.BlockSpec(shape, idx,
                            pipeline_mode=pl.Buffered(weight_buffer_count))

    in_specs = [
        pl.BlockSpec((Bt * L, E), lambda i: (i, 0)),       # x1, flattened tile
        pl.BlockSpec((Bt * L, 1), lambda i: (i, 0)),       # mask column
        const_spec((E, H)), const_spec((1, H)),            # fc_reduce
        const_spec((K, H, H)), const_spec((1, H)),         # cnn1
        const_spec((K, H, H)), const_spec((1, H)),         # cnn2
        const_spec((H, H)), const_spec((1, H)),            # pooling linear
        const_spec((H, H)), const_spec((1, H)),            # dist_motifs fc1
        const_spec((H, 1)), const_spec((1, 1)),            # dist_motifs fc2
        const_spec((H, H)), const_spec((1, H)),            # dist_semantics fc1
        const_spec((H, 1)), const_spec((1, 1)),            # dist_semantics fc2
    ]
    # Per-grid-block output tile -> the batch-tile axis is safely "parallel".
    out_spec = pl.BlockSpec((Bt, 1), lambda i: (i, 0))

    # Explicit scoped-VMEM budget (v5e scoped default is only 16 MiB; v7x
    # physical VMEM is 64 MiB): rough working-set estimate with slack, clamped.
    dtb = 2 if use_bf16 else 4
    est = (2 * (Bt * L) * (E * dtb + 4)                             # x + mask, 2 bufs
           + 2 * dtb * (E * H + 2 * K * H * H + 3 * H * H + 2 * H)  # weights, 2 bufs
           + 2 * 4 * (7 * H + 2)                                    # biases, 2 bufs
           + 8 * (Bt * L) * H * 4 + 2 * Bt * 4)                     # f32 slabs in kernel
    vmem_limit = int(max(16 << 20, min(48 << 20, 4 * est)))

    kernel = functools.partial(_decoder_kernel, Bt, L, K, cdt)
    return pl.pallas_call(
        kernel,
        out_shape=jax.ShapeDtypeStruct((B, 1), jnp.float32),
        grid_spec=pltpu.PrefetchScalarGridSpec(
            num_scalar_prefetch=0,
            grid=(nb,),
            in_specs=in_specs,
            out_specs=out_spec),
        compiler_params=pltpu.CompilerParams(
            dimension_semantics=("parallel",),
            vmem_limit_bytes=vmem_limit),
    )(x_flat, mask_flat,
      wp("w_fc"), bp("b_fc"),
      wp("w_c1"), bp("b_c1"),
      wp("w_c2"), bp("b_c2"),
      wp("w_pool"), bp("b_pool"),
      wp("w_m1"), bp("b_m1"), wp("w_m2"), bp("b_m2"),
      wp("w_s1"), bp("b_s1"), wp("w_s2"), bp("b_s2"))


def _init_params(key, E, H, K):
    """Deterministic synthetic parameters (shapes from the module __init__)."""
    ks = jax.random.split(key, 16)
    n = lambda k, shape: (0.1 * jax.random.normal(k, shape)).astype(jnp.float32)
    # Conv weights generated in PyTorch layout (out, in, K), rearranged to
    # (K, in, out) so each tap is a plain (H_in, H_out) matmul operand.
    w_c1_pt = n(ks[2], (H, H, K))
    w_c2_pt = n(ks[4], (H, H, K))
    return {
        "w_fc": n(ks[0], (E, H)),  "b_fc": n(ks[1], (1, H)),
        "w_c1": jnp.transpose(w_c1_pt, (2, 1, 0)), "b_c1": n(ks[3], (1, H)),
        "w_c2": jnp.transpose(w_c2_pt, (2, 1, 0)), "b_c2": n(ks[5], (1, H)),
        "w_pool": n(ks[6], (H, H)), "b_pool": n(ks[7], (1, H)),
        "w_m1": n(ks[8], (H, H)),  "b_m1": n(ks[9], (1, H)),
        "w_m2": n(ks[10], (H, 1)), "b_m2": n(ks[11], (1, 1)),
        "w_s1": n(ks[12], (H, H)), "b_s1": n(ks[13], (1, H)),
        "w_s2": n(ks[14], (H, 1)), "b_s2": n(ks[15], (1, 1)),
    }


def _reference(x1, x1_mask, params, K):
    """Pure-JAX reference matching the PyTorch forward (eval mode)."""
    B, L, E = x1.shape
    H = params["w_fc"].shape[1]
    mask = jnp.broadcast_to(x1_mask[:, :, None], (B, L, H)).astype(jnp.float32)
    pad = (K - 1) // 2

    h = x1 @ params["w_fc"] + params["b_fc"]
    sem = h[:, 0, :]
    hm = h * mask

    def conv(inp, w, b):
        padded = jnp.pad(inp, ((0, 0), (pad, pad), (0, 0)))
        acc = jnp.zeros((B, L, H), jnp.float32) + b
        for k in range(K):
            acc = acc + padded[:, k:k + L, :] @ w[k]
        return acc

    c1 = jnp.tanh(conv(hm, params["w_c1"], params["b_c1"]))
    c2 = conv(c1, params["w_c2"], params["b_c2"])
    motif = jnp.tanh(hm + c2)

    pm = motif * mask
    pooled = jnp.max(jnp.maximum(pm @ params["w_pool"] + params["b_pool"], 0.0), axis=1)

    ts = jnp.tanh(sem @ params["w_s1"] + params["b_s1"])
    ds = ts @ params["w_s2"] + params["b_s2"]
    tm = jnp.tanh(pooled @ params["w_m1"] + params["b_m1"])
    dm = tm @ params["w_m2"] + params["b_m2"]
    return ds + dm


if __name__ == "__main__":
    B, L, E, H, K = 2, 8, 32, 32, 3   # batch, seq, encoder_dim, hidden_size, kernel

    key = jax.random.PRNGKey(0)
    k_x1, k_x2, k_p = jax.random.split(key, 3)
    x1 = jax.random.normal(k_x1, (B, L, E), dtype=jnp.float32)
    x2 = jax.random.normal(k_x2, (B, L, E), dtype=jnp.float32)   # unused by fwd
    x1_mask = jnp.ones((B, L), dtype=jnp.float32).at[0, L - 2:].set(0.0)

    params = _init_params(k_p, E, H, K)
    ref = _reference(x1, x1_mask, params, K)

    # Exactness check: full-f32 path.
    out_f32 = jax.block_until_ready(
        mono_muformer_decoder(x1, x2, x1_mask, params, kernel_size=K,
                              use_bf16=False))
    assert out_f32.shape == (B, 1)
    assert jnp.allclose(out_f32, ref, atol=1e-4, rtol=1e-4), (out_f32, ref)

    # Performance path: bf16 MXU operands, f32 accumulation / element-wise.
    out_bf16 = jax.block_until_ready(
        mono_muformer_decoder(x1, x2, x1_mask, params, kernel_size=K,
                              use_bf16=True))
    assert out_bf16.shape == (B, 1)
    assert jnp.allclose(out_bf16, ref, atol=3e-2, rtol=3e-2), (out_bf16, ref)

    print("KERNEL_OK")
</pallas_src>

<mosaic_0001>
module attributes {stable_mosaic.version = 11 : i64} {
  func.func @_decoder_kernel(%arg0: i32, %arg1: memref<16x32xf32, #tpu.memory_space<vmem>>, %arg2: memref<16x1xf32, #tpu.memory_space<vmem>>, %arg3: memref<32x32xf32, #tpu.memory_space<vmem>>, %arg4: memref<1x32xf32, #tpu.memory_space<vmem>>, %arg5: memref<3x32x32xf32, #tpu.memory_space<vmem>>, %arg6: memref<1x32xf32, #tpu.memory_space<vmem>>, %arg7: memref<3x32x32xf32, #tpu.memory_space<vmem>>, %arg8: memref<1x32xf32, #tpu.memory_space<vmem>>, %arg9: memref<32x32xf32, #tpu.memory_space<vmem>>, %arg10: memref<1x32xf32, #tpu.memory_space<vmem>>, %arg11: memref<32x32xf32, #tpu.memory_space<vmem>>, %arg12: memref<1x32xf32, #tpu.memory_space<vmem>>, %arg13: memref<32x1xf32, #tpu.memory_space<vmem>>, %arg14: memref<1x1xf32, #tpu.memory_space<vmem>>, %arg15: memref<32x32xf32, #tpu.memory_space<vmem>>, %arg16: memref<1x32xf32, #tpu.memory_space<vmem>>, %arg17: memref<32x1xf32, #tpu.memory_space<vmem>>, %arg18: memref<1x1xf32, #tpu.memory_space<vmem>>, %arg19: memref<2x1xf32, #tpu.memory_space<vmem>>) attributes {dimension_semantics = [#tpu.dimension_semantics<parallel>], iteration_bounds = array<i64: 1>, scalar_prefetch = 0 : i64, scratch_operands = 0 : i64, tpu.core_type = #tpu.core_type<tc>, window_params = [{transform_indices = @transform_0, window_bounds = array<i64: 16, 32>}, {transform_indices = @transform_1, window_bounds = array<i64: 16, 1>}, {pipeline_mode = #tpu.pipeline_mode<synchronous>, transform_indices = @transform_2, window_bounds = array<i64: 32, 32>}, {pipeline_mode = #tpu.pipeline_mode<synchronous>, transform_indices = @transform_3, window_bounds = array<i64: 1, 32>}, {pipeline_mode = #tpu.pipeline_mode<synchronous>, transform_indices = @transform_4, window_bounds = array<i64: 3, 32, 32>}, {pipeline_mode = #tpu.pipeline_mode<synchronous>, transform_indices = @transform_5, window_bounds = array<i64: 1, 32>}, {pipeline_mode = #tpu.pipeline_mode<synchronous>, transform_indices = @transform_6, window_bounds = array<i64: 3, 32, 32>}, {pipeline_mode = #tpu.pipeline_mode<synchronous>, transform_indices = @transform_7, window_bounds = array<i64: 1, 32>}, {pipeline_mode = #tpu.pipeline_mode<synchronous>, transform_indices = @transform_8, window_bounds = array<i64: 32, 32>}, {pipeline_mode = #tpu.pipeline_mode<synchronous>, transform_indices = @transform_9, window_bounds = array<i64: 1, 32>}, {pipeline_mode = #tpu.pipeline_mode<synchronous>, transform_indices = @transform_10, window_bounds = array<i64: 32, 32>}, {pipeline_mode = #tpu.pipeline_mode<synchronous>, transform_indices = @transform_11, window_bounds = array<i64: 1, 32>}, {pipeline_mode = #tpu.pipeline_mode<synchronous>, transform_indices = @transform_12, window_bounds = array<i64: 32, 1>}, {pipeline_mode = #tpu.pipeline_mode<synchronous>, transform_indices = @transform_13, window_bounds = array<i64: 1, 1>}, {pipeline_mode = #tpu.pipeline_mode<synchronous>, transform_indices = @transform_14, window_bounds = array<i64: 32, 32>}, {pipeline_mode = #tpu.pipeline_mode<synchronous>, transform_indices = @transform_15, window_bounds = array<i64: 1, 32>}, {pipeline_mode = #tpu.pipeline_mode<synchronous>, transform_indices = @transform_16, window_bounds = array<i64: 32, 1>}, {pipeline_mode = #tpu.pipeline_mode<synchronous>, transform_indices = @transform_17, window_bounds = array<i64: 1, 1>}, {transform_indices = @transform_18, window_bounds = array<i64: 2, 1>}]} {
    %c0 = arith.constant 0 : index
    %c0_0 = arith.constant 0 : index
    %0 = vector.load %arg2[%c0, %c0_0] : memref<16x1xf32, #tpu.memory_space<vmem>>, vector<16x1xf32>
    %1 = tpu.iota {dimensions = array<i32: 1>} : vector<2x8x1xi32>
    %2 = vector.shape_cast %1 : vector<2x8x1xi32> to vector<16x1xi32>
    %c0_1 = arith.constant 0 : index
    %c0_2 = arith.constant 0 : index
    %3 = vector.load %arg1[%c0_1, %c0_2] : memref<16x32xf32, #tpu.memory_space<vmem>>, vector<16x32xf32>
    %c0_3 = arith.constant 0 : index
    %c0_4 = arith.constant 0 : index
    %4 = vector.load %arg3[%c0_3, %c0_4] : memref<32x32xf32, #tpu.memory_space<vmem>>, vector<32x32xf32>
    %cst = arith.constant dense<0.000000e+00> : vector<16x32xf32>
    %5 = tpu.matmul %3, %4, %cst {dimension_numbers = #tpu.dot_dimension_numbers<[1], [0], [0], [1], [0, 0, 1, 1], [], []>} : vector<16x32xf32>, vector<32x32xf32>, vector<16x32xf32> -> vector<16x32xf32>
    %c0_5 = arith.constant 0 : index
    %c0_6 = arith.constant 0 : index
    %6 = vector.load %arg4[%c0_5, %c0_6] : memref<1x32xf32, #tpu.memory_space<vmem>>, vector<1x32xf32>
    %7 = vector.broadcast %6 : vector<1x32xf32> to vector<16x32xf32>
    %8 = arith.addf %5, %7 : vector<16x32xf32>
    %9 = vector.shape_cast %8 : vector<16x32xf32> to vector<2x8x32xf32>
    %10 = vector.extract_strided_slice %9 {offsets = [0, 0, 0], sizes = [2, 1, 32], strides = [1, 1, 1]} : vector<2x8x32xf32> to vector<2x1x32xf32>
    %11 = vector.shape_cast %10 : vector<2x1x32xf32> to vector<2x32xf32>
    %12 = vector.broadcast %0 : vector<16x1xf32> to vector<16x32xf32>
    %13 = arith.mulf %8, %12 : vector<16x32xf32>
    %c1_i32 = arith.constant 1 : i32
    %14 = tpu.dynamic_rotate %13 by %c1_i32 dim 0 : vector<16x32xf32>, i32 -> vector<16x32xf32>
    %c1_i32_7 = arith.constant 1 : i32
    %15 = vector.broadcast %c1_i32_7 : i32 to vector<16x1xi32>
    %16 = arith.cmpi sge, %2, %15 : vector<16x1xi32>
    %17 = arith.extui %16 : vector<16x1xi1> to vector<16x1xi32>
    %18 = arith.sitofp %17 : vector<16x1xi32> to vector<16x1xf32>
    %19 = vector.broadcast %18 : vector<16x1xf32> to vector<16x32xf32>
    %20 = arith.mulf %14, %19 : vector<16x32xf32>
    %c0_8 = arith.constant 0 : index
    %c0_9 = arith.constant 0 : index
    %c0_10 = arith.constant 0 : index
    %21 = vector.load %arg5[%c0_8, %c0_9, %c0_10] : memref<3x32x32xf32, #tpu.memory_space<vmem>>, vector<1x32x32xf32>
    %22 = vector.shape_cast %21 : vector<1x32x32xf32> to vector<32x32xf32>
    %cst_11 = arith.constant dense<0.000000e+00> : vector<16x32xf32>
    %23 = tpu.matmul %20, %22, %cst_11 {dimension_numbers = #tpu.dot_dimension_numbers<[1], [0], [0], [1], [0, 0, 1, 1], [], []>} : vector<16x32xf32>, vector<32x32xf32>, vector<16x32xf32> -> vector<16x32xf32>
    %c1 = arith.constant 1 : index
    %c0_12 = arith.constant 0 : index
    %c0_13 = arith.constant 0 : index
    %24 = vector.load %arg5[%c1, %c0_12, %c0_13] : memref<3x32x32xf32, #tpu.memory_space<vmem>>, vector<1x32x32xf32>
    %25 = vector.shape_cast %24 : vector<1x32x32xf32> to vector<32x32xf32>
    %cst_14 = arith.constant dense<0.000000e+00> : vector<16x32xf32>
    %26 = tpu.matmul %13, %25, %cst_14 {dimension_numbers = #tpu.dot_dimension_numbers<[1], [0], [0], [1], [0, 0, 1, 1], [], []>} : vector<16x32xf32>, vector<32x32xf32>, vector<16x32xf32> -> vector<16x32xf32>
    %27 = arith.addf %23, %26 : vector<16x32xf32>
    %c15_i32 = arith.constant 15 : i32
    %28 = tpu.dynamic_rotate %13 by %c15_i32 dim 0 : vector<16x32xf32>, i32 -> vector<16x32xf32>
    %c7_i32 = arith.constant 7 : i32
    %29 = vector.broadcast %c7_i32 : i32 to vector<16x1xi32>
    %30 = arith.cmpi slt, %2, %29 : vector<16x1xi32>
    %31 = arith.extui %30 : vector<16x1xi1> to vector<16x1xi32>
    %32 = arith.sitofp %31 : vector<16x1xi32> to vector<16x1xf32>
    %33 = vector.broadcast %32 : vector<16x1xf32> to vector<16x32xf32>
    %34 = arith.mulf %28, %33 : vector<16x32xf32>
    %c2 = arith.constant 2 : index
    %c0_15 = arith.constant 0 : index
    %c0_16 = arith.constant 0 : index
    %35 = vector.load %arg5[%c2, %c0_15, %c0_16] : memref<3x32x32xf32, #tpu.memory_space<vmem>>, vector<1x32x32xf32>
    %36 = vector.shape_cast %35 : vector<1x32x32xf32> to vector<32x32xf32>
    %cst_17 = arith.constant dense<0.000000e+00> : vector<16x32xf32>
    %37 = tpu.matmul %34, %36, %cst_17 {dimension_numbers = #tpu.dot_dimension_numbers<[1], [0], [0], [1], [0, 0, 1, 1], [], []>} : vector<16x32xf32>, vector<32x32xf32>, vector<16x32xf32> -> vector<16x32xf32>
    %38 = arith.addf %27, %37 : vector<16x32xf32>
    %c0_18 = arith.constant 0 : index
    %c0_19 = arith.constant 0 : index
    %39 = vector.load %arg6[%c0_18, %c0_19] : memref<1x32xf32, #tpu.memory_space<vmem>>, vector<1x32xf32>
    %40 = vector.broadcast %39 : vector<1x32xf32> to vector<16x32xf32>
    %41 = arith.addf %38, %40 : vector<16x32xf32>
    %42 = math.tanh %41 : vector<16x32xf32>
    %c1_i32_20 = arith.constant 1 : i32
    %43 = tpu.dynamic_rotate %42 by %c1_i32_20 dim 0 : vector<16x32xf32>, i32 -> vector<16x32xf32>
    %c1_i32_21 = arith.constant 1 : i32
    %44 = vector.broadcast %c1_i32_21 : i32 to vector<16x1xi32>
    %45 = arith.cmpi sge, %2, %44 : vector<16x1xi32>
    %46 = arith.extui %45 : vector<16x1xi1> to vector<16x1xi32>
    %47 = arith.sitofp %46 : vector<16x1xi32> to vector<16x1xf32>
    %48 = vector.broadcast %47 : vector<16x1xf32> to vector<16x32xf32>
    %49 = arith.mulf %43, %48 : vector<16x32xf32>
    %c0_22 = arith.constant 0 : index
    %c0_23 = arith.constant 0 : index
    %c0_24 = arith.constant 0 : index
    %50 = vector.load %arg7[%c0_22, %c0_23, %c0_24] : memref<3x32x32xf32, #tpu.memory_space<vmem>>, vector<1x32x32xf32>
    %51 = vector.shape_cast %50 : vector<1x32x32xf32> to vector<32x32xf32>
    %cst_25 = arith.constant dense<0.000000e+00> : vector<16x32xf32>
    %52 = tpu.matmul %49, %51, %cst_25 {dimension_numbers = #tpu.dot_dimension_numbers<[1], [0], [0], [1], [0, 0, 1, 1], [], []>} : vector<16x32xf32>, vector<32x32xf32>, vector<16x32xf32> -> vector<16x32xf32>
    %c1_26 = arith.constant 1 : index
    %c0_27 = arith.constant 0 : index
    %c0_28 = arith.constant 0 : index
    %53 = vector.load %arg7[%c1_26, %c0_27, %c0_28] : memref<3x32x32xf32, #tpu.memory_space<vmem>>, vector<1x32x32xf32>
    %54 = vector.shape_cast %53 : vector<1x32x32xf32> to vector<32x32xf32>
    %cst_29 = arith.constant dense<0.000000e+00> : vector<16x32xf32>
    %55 = tpu.matmul %42, %54, %cst_29 {dimension_numbers = #tpu.dot_dimension_numbers<[1], [0], [0], [1], [0, 0, 1, 1], [], []>} : vector<16x32xf32>, vector<32x32xf32>, vector<16x32xf32> -> vector<16x32xf32>
    %56 = arith.addf %52, %55 : vector<16x32xf32>
    %c15_i32_30 = arith.constant 15 : i32
    %57 = tpu.dynamic_rotate %42 by %c15_i32_30 dim 0 : vector<16x32xf32>, i32 -> vector<16x32xf32>
    %c7_i32_31 = arith.constant 7 : i32
    %58 = vector.broadcast %c7_i32_31 : i32 to vector<16x1xi32>
    %59 = arith.cmpi slt, %2, %58 : vector<16x1xi32>
    %60 = arith.extui %59 : vector<16x1xi1> to vector<16x1xi32>
    %61 = arith.sitofp %60 : vector<16x1xi32> to vector<16x1xf32>
    %62 = vector.broadcast %61 : vector<16x1xf32> to vector<16x32xf32>
    %63 = arith.mulf %57, %62 : vector<16x32xf32>
    %c2_32 = arith.constant 2 : index
    %c0_33 = arith.constant 0 : index
    %c0_34 = arith.constant 0 : index
    %64 = vector.load %arg7[%c2_32, %c0_33, %c0_34] : memref<3x32x32xf32, #tpu.memory_space<vmem>>, vector<1x32x32xf32>
    %65 = vector.shape_cast %64 : vector<1x32x32xf32> to vector<32x32xf32>
    %cst_35 = arith.constant dense<0.000000e+00> : vector<16x32xf32>
    %66 = tpu.matmul %63, %65, %cst_35 {dimension_numbers = #tpu.dot_dimension_numbers<[1], [0], [0], [1], [0, 0, 1, 1], [], []>} : vector<16x32xf32>, vector<32x32xf32>, vector<16x32xf32> -> vector<16x32xf32>
    %67 = arith.addf %56, %66 : vector<16x32xf32>
    %c0_36 = arith.constant 0 : index
    %c0_37 = arith.constant 0 : index
    %68 = vector.load %arg8[%c0_36, %c0_37] : memref<1x32xf32, #tpu.memory_space<vmem>>, vector<1x32xf32>
    %69 = vector.broadcast %68 : vector<1x32xf32> to vector<16x32xf32>
    %70 = arith.addf %67, %69 : vector<16x32xf32>
    %71 = arith.addf %13, %70 : vector<16x32xf32>
    %72 = math.tanh %71 : vector<16x32xf32>
    %73 = vector.broadcast %0 : vector<16x1xf32> to vector<16x32xf32>
    %74 = arith.mulf %72, %73 : vector<16x32xf32>
    %c0_38 = arith.constant 0 : index
    %c0_39 = arith.constant 0 : index
    %75 = vector.load %arg9[%c0_38, %c0_39] : memref<32x32xf32, #tpu.memory_space<vmem>>, vector<32x32xf32>
    %cst_40 = arith.constant dense<0.000000e+00> : vector<16x32xf32>
    %76 = tpu.matmul %74, %75, %cst_40 {dimension_numbers = #tpu.dot_dimension_numbers<[1], [0], [0], [1], [0, 0, 1, 1], [], []>} : vector<16x32xf32>, vector<32x32xf32>, vector<16x32xf32> -> vector<16x32xf32>
    %c0_41 = arith.constant 0 : index
    %c0_42 = arith.constant 0 : index
    %77 = vector.load %arg10[%c0_41, %c0_42] : memref<1x32xf32, #tpu.memory_space<vmem>>, vector<1x32xf32>
    %78 = vector.broadcast %77 : vector<1x32xf32> to vector<16x32xf32>
    %79 = arith.addf %76, %78 : vector<16x32xf32>
    %cst_43 = arith.constant 0.000000e+00 : f32
    %80 = vector.broadcast %cst_43 : f32 to vector<16x32xf32>
    %81 = arith.maximumf %79, %80 : vector<16x32xf32>
    %82 = vector.shape_cast %81 : vector<16x32xf32> to vector<2x8x32xf32>
    %cst_44 = arith.constant dense<0xFF800000> : vector<2x32xf32>
    %83 = vector.multi_reduction <maximumf>, %82, %cst_44 [1] : vector<2x8x32xf32> to vector<2x32xf32>
    %c0_45 = arith.constant 0 : index
    %c0_46 = arith.constant 0 : index
    %84 = vector.load %arg15[%c0_45, %c0_46] : memref<32x32xf32, #tpu.memory_space<vmem>>, vector<32x32xf32>
    %cst_47 = arith.constant dense<0.000000e+00> : vector<2x32xf32>
    %85 = tpu.matmul %11, %84, %cst_47 {dimension_numbers = #tpu.dot_dimension_numbers<[1], [0], [0], [1], [0, 0, 1, 1], [], []>} : vector<2x32xf32>, vector<32x32xf32>, vector<2x32xf32> -> vector<2x32xf32>
    %c0_48 = arith.constant 0 : index
    %c0_49 = arith.constant 0 : index
    %86 = vector.load %arg16[%c0_48, %c0_49] : memref<1x32xf32, #tpu.memory_space<vmem>>, vector<1x32xf32>
    %87 = vector.broadcast %86 : vector<1x32xf32> to vector<2x32xf32>
    %88 = arith.addf %85, %87 : vector<2x32xf32>
    %89 = math.tanh %88 : vector<2x32xf32>
    %c0_50 = arith.constant 0 : index
    %c0_51 = arith.constant 0 : index
    %90 = vector.load %arg17[%c0_50, %c0_51] : memref<32x1xf32, #tpu.memory_space<vmem>>, vector<32x1xf32>
    %cst_52 = arith.constant dense<0.000000e+00> : vector<2x1xf32>
    %91 = tpu.matmul %89, %90, %cst_52 {dimension_numbers = #tpu.dot_dimension_numbers<[1], [0], [0], [1], [0, 0, 1, 1], [], []>} : vector<2x32xf32>, vector<32x1xf32>, vector<2x1xf32> -> vector<2x1xf32>
    %c0_53 = arith.constant 0 : index
    %c0_54 = arith.constant 0 : index
    %92 = vector.load %arg18[%c0_53, %c0_54] : memref<1x1xf32, #tpu.memory_space<vmem>>, vector<1x1xf32>
    %93 = vector.broadcast %92 : vector<1x1xf32> to vector<2x1xf32>
    %94 = arith.addf %91, %93 : vector<2x1xf32>
    %c0_55 = arith.constant 0 : index
    %c0_56 = arith.constant 0 : index
    %95 = vector.load %arg11[%c0_55, %c0_56] : memref<32x32xf32, #tpu.memory_space<vmem>>, vector<32x32xf32>
    %cst_57 = arith.constant dense<0.000000e+00> : vector<2x32xf32>
    %96 = tpu.matmul %83, %95, %cst_57 {dimension_numbers = #tpu.dot_dimension_numbers<[1], [0], [0], [1], [0, 0, 1, 1], [], []>} : vector<2x32xf32>, vector<32x32xf32>, vector<2x32xf32> -> vector<2x32xf32>
    %c0_58 = arith.constant 0 : index
    %c0_59 = arith.constant 0 : index
    %97 = vector.load %arg12[%c0_58, %c0_59] : memref<1x32xf32, #tpu.memory_space<vmem>>, vector<1x32xf32>
    %98 = vector.broadcast %97 : vector<1x32xf32> to vector<2x32xf32>
    %99 = arith.addf %96, %98 : vector<2x32xf32>
    %100 = math.tanh %99 : vector<2x32xf32>
    %c0_60 = arith.constant 0 : index
    %c0_61 = arith.constant 0 : index
    %101 = vector.load %arg13[%c0_60, %c0_61] : memref<32x1xf32, #tpu.memory_space<vmem>>, vector<32x1xf32>
    %cst_62 = arith.constant dense<0.000000e+00> : vector<2x1xf32>
    %102 = tpu.matmul %100, %101, %cst_62 {dimension_numbers = #tpu.dot_dimension_numbers<[1], [0], [0], [1], [0, 0, 1, 1], [], []>} : vector<2x32xf32>, vector<32x1xf32>, vector<2x1xf32> -> vector<2x1xf32>
    %c0_63 = arith.constant 0 : index
    %c0_64 = arith.constant 0 : index
    %103 = vector.load %arg14[%c0_63, %c0_64] : memref<1x1xf32, #tpu.memory_space<vmem>>, vector<1x1xf32>
    %104 = vector.broadcast %103 : vector<1x1xf32> to vector<2x1xf32>
    %105 = arith.addf %102, %104 : vector<2x1xf32>
    %106 = arith.addf %94, %105 : vector<2x1xf32>
    %c0_65 = arith.constant 0 : index
    %c0_66 = arith.constant 0 : index
    %107 = vector.load %arg19[%c0_65, %c0_66] : memref<2x1xf32, #tpu.memory_space<vmem>>, vector<2x1xf32>
    tpu.vector_store %arg19[%c0_65, %c0_66], %106 {strides = array<i32>} : memref<2x1xf32, #tpu.memory_space<vmem>>, vector<2x1xf32>,
    return
  }
  func.func @transform_0(%arg0: i32) -> (i32, i32) {
    %c0_i32 = arith.constant 0 : i32
    %c0_i32_0 = arith.constant 0 : i32
    return %arg0, %c0_i32 : i32, i32
  }
  func.func @transform_1(%arg0: i32) -> (i32, i32) {
    %c0_i32 = arith.constant 0 : i32
    %c0_i32_0 = arith.constant 0 : i32
    return %arg0, %c0_i32 : i32, i32
  }
  func.func @transform_2(%arg0: i32) -> (i32, i32) {
    %c0_i32 = arith.constant 0 : i32
    %c0_i32_0 = arith.constant 0 : i32
    %c0_i32_1 = arith.constant 0 : i32
    return %c0_i32, %c0_i32_0 : i32, i32
  }
  func.func @transform_3(%arg0: i32) -> (i32, i32) {
    %c0_i32 = arith.constant 0 : i32
    %c0_i32_0 = arith.constant 0 : i32
    %c0_i32_1 = arith.constant 0 : i32
    return %c0_i32, %c0_i32_0 : i32, i32
  }
  func.func @transform_4(%arg0: i32) -> (i32, i32, i32) {
    %c0_i32 = arith.constant 0 : i32
    %c0_i32_0 = arith.constant 0 : i32
    %c0_i32_1 = arith.constant 0 : i32
    %c0_i32_2 = arith.constant 0 : i32
    return %c0_i32, %c0_i32_0, %c0_i32_1 : i32, i32, i32
  }
  func.func @transform_5(%arg0: i32) -> (i32, i32) {
    %c0_i32 = arith.constant 0 : i32
    %c0_i32_0 = arith.constant 0 : i32
    %c0_i32_1 = arith.constant 0 : i32
    return %c0_i32, %c0_i32_0 : i32, i32
  }
  func.func @transform_6(%arg0: i32) -> (i32, i32, i32) {
    %c0_i32 = arith.constant 0 : i32
    %c0_i32_0 = arith.constant 0 : i32
    %c0_i32_1 = arith.constant 0 : i32
    %c0_i32_2 = arith.constant 0 : i32
    return %c0_i32, %c0_i32_0, %c0_i32_1 : i32, i32, i32
  }
  func.func @transform_7(%arg0: i32) -> (i32, i32) {
    %c0_i32 = arith.constant 0 : i32
    %c0_i32_0 = arith.constant 0 : i32
    %c0_i32_1 = arith.constant 0 : i32
    return %c0_i32, %c0_i32_0 : i32, i32
  }
  func.func @transform_8(%arg0: i32) -> (i32, i32) {
    %c0_i32 = arith.constant 0 : i32
    %c0_i32_0 = arith.constant 0 : i32
    %c0_i32_1 = arith.constant 0 : i32
    return %c0_i32, %c0_i32_0 : i32, i32
  }
  func.func @transform_9(%arg0: i32) -> (i32, i32) {
    %c0_i32 = arith.constant 0 : i32
    %c0_i32_0 = arith.constant 0 : i32
    %c0_i32_1 = arith.constant 0 : i32
    return %c0_i32, %c0_i32_0 : i32, i32
  }
  func.func @transform_10(%arg0: i32) -> (i32, i32) {
    %c0_i32 = arith.constant 0 : i32
    %c0_i32_0 = arith.constant 0 : i32
    %c0_i32_1 = arith.constant 0 : i32
    return %c0_i32, %c0_i32_0 : i32, i32
  }
  func.func @transform_11(%arg0: i32) -> (i32, i32) {
    %c0_i32 = arith.constant 0 : i32
    %c0_i32_0 = arith.constant 0 : i32
    %c0_i32_1 = arith.constant 0 : i32
    return %c0_i32, %c0_i32_0 : i32, i32
  }
  func.func @transform_12(%arg0: i32) -> (i32, i32) {
    %c0_i32 = arith.constant 0 : i32
    %c0_i32_0 = arith.constant 0 : i32
    %c0_i32_1 = arith.constant 0 : i32
    return %c0_i32, %c0_i32_0 : i32, i32
  }
  func.func @transform_13(%arg0: i32) -> (i32, i32) {
    %c0_i32 = arith.constant 0 : i32
    %c0_i32_0 = arith.constant 0 : i32
    %c0_i32_1 = arith.constant 0 : i32
    return %c0_i32, %c0_i32_0 : i32, i32
  }
  func.func @transform_14(%arg0: i32) -> (i32, i32) {
    %c0_i32 = arith.constant 0 : i32
    %c0_i32_0 = arith.constant 0 : i32
    %c0_i32_1 = arith.constant 0 : i32
    return %c0_i32, %c0_i32_0 : i32, i32
  }
  func.func @transform_15(%arg0: i32) -> (i32, i32) {
    %c0_i32 = arith.constant 0 : i32
    %c0_i32_0 = arith.constant 0 : i32
    %c0_i32_1 = arith.constant 0 : i32
    return %c0_i32, %c0_i32_0 : i32, i32
  }
  func.func @transform_16(%arg0: i32) -> (i32, i32) {
    %c0_i32 = arith.constant 0 : i32
    %c0_i32_0 = arith.constant 0 : i32
    %c0_i32_1 = arith.constant 0 : i32
    return %c0_i32, %c0_i32_0 : i32, i32
  }
  func.func @transform_17(%arg0: i32) -> (i32, i32) {
    %c0_i32 = arith.constant 0 : i32
    %c0_i32_0 = arith.constant 0 : i32
    %c0_i32_1 = arith.constant 0 : i32
    return %c0_i32, %c0_i32_0 : i32, i32
  }
  func.func @transform_18(%arg0: i32) -> (i32, i32) {
    %c0_i32 = arith.constant 0 : i32
    %c0_i32_0 = arith.constant 0 : i32
    return %arg0, %c0_i32 : i32, i32
  }
}

</mosaic_0001>

<llo_original>
// kernel: tpu_custom_call.1
$region0: #{tpu_custom_call.1}
  #allocation0 [shape = 'u32[]', space=smem, size = 0x4, offset = 0x4, fixed_abs, tag = 'smem constant byte address 0x4 - core index']
  #allocation1 [shape = 'u32[144,128]{1,0:T(1,128)}', space=vmem, size = 0x12000, scoped, tag = 'internal scratch']
  #allocation2 [shape = 'f32[1,1]{1,0:T(1,128)S(1)}', space=vmem, size = 0x200, scoped, tag = 'scoped memory for tpu_custom_call.1']
  #allocation3 [shape = 'f32[1,1]{1,0:T(1,128)S(1)}', space=vmem, size = 0x200, scoped, tag = 'scoped memory for tpu_custom_call.1']
  %s0 = inlined_call_operand.hbm [shape: f32[16,32], index: 0, kind: input, shape index: {}]
  %s1 = inlined_call_operand.vmem [shape: f32[16,1], index: 1, kind: input, shape index: {}]
  %s2 = inlined_call_operand.hbm [shape: f32[32,32], index: 2, kind: input, shape index: {}]
  %s3 = inlined_call_operand.vmem [shape: f32[1,32], index: 3, kind: input, shape index: {}]
  %s4 = inlined_call_operand.hbm [shape: f32[3,32,32], index: 4, kind: input, shape index: {}]
  %s5 = inlined_call_operand.hbm [shape: f32[1,32], index: 5, kind: input, shape index: {}]
  %s6 = inlined_call_operand.vmem [shape: f32[3,32,32], index: 6, kind: input, shape index: {}]
  %s7 = inlined_call_operand.vmem [shape: f32[1,32], index: 7, kind: input, shape index: {}]
  %s8 = inlined_call_operand.hbm [shape: f32[32,32], index: 8, kind: input, shape index: {}]
  %s9 = inlined_call_operand.vmem [shape: f32[1,32], index: 9, kind: input, shape index: {}]
  %s10 = inlined_call_operand.hbm [shape: f32[32,32], index: 10, kind: input, shape index: {}]
  %s11 = inlined_call_operand.vmem [shape: f32[1,32], index: 11, kind: input, shape index: {}]
  %s12 = inlined_call_operand.vmem [shape: f32[32,1], index: 12, kind: input, shape index: {}]
  %s13 = inlined_call_operand.<no memory space> [shape: f32[1,1], index: 13, kind: input, shape index: {}]
  %s14 = inlined_call_operand.hbm [shape: f32[32,32], index: 14, kind: input, shape index: {}]
  %s15 = inlined_call_operand.vmem [shape: f32[1,32], index: 15, kind: input, shape index: {}]
  %s16 = inlined_call_operand.vmem [shape: f32[32,1], index: 16, kind: input, shape index: {}]
  %s17 = inlined_call_operand.<no memory space> [shape: f32[1,1], index: 17, kind: input, shape index: {}]
  %s18 = inlined_call_operand.vmem [shape: f32[2,1], index: 18, kind: output, shape index: {}]
  %s19 = sld [smem:[#allocation0]]
  $region110: #{tpu_custom_call.1} parent=0
    _
  %s21 = ssub.s32 1, %s19
  %s22 = scalar_select 0, %s21, %s19
  %v23 = vstv %s13
  %24 = vst [vmem:[#allocation2] sm:$0x1] %v23
  %v25 = vstv %s17
  %26 = vst [vmem:[#allocation3] sm:$0x1] %v25
  $region1: #{tpu_custom_call.1} parent=0
    #allocation4 [shape = 'u8[8192]{0}', space=vmem, size = 0x2000, scoped, tag = 'input window, operand 0, single buffered']
    #allocation5 [shape = 's32[1]{0}', space=sflag, size = 0x4, scoped, tag = 'scoped memory for tpu_custom_call.1']
    #allocation6 [shape = 'u8[16384]{0}', space=vmem, size = 0x4000, scoped, tag = 'input window, operand 2, single buffered']
    #allocation7 [shape = 's32[1]{0}', space=sflag, size = 0x4, scoped, tag = 'scoped memory for tpu_custom_call.1']
    #allocation8 [shape = 'u8[49152]{0}', space=vmem, size = 0xc000, scoped, tag = 'input window, operand 4, single buffered']
    #allocation9 [shape = 'u8[512]{0}', space=vmem, size = 0x400, scoped, tag = 'input window, operand 5, single buffered']
    #allocation10 [shape = 's32[1]{0}', space=sflag, size = 0x4, scoped, tag = 'scoped memory for tpu_custom_call.1']
    #allocation11 [shape = 'u8[16384]{0}', space=vmem, size = 0x4000, scoped, tag = 'input window, operand 8, single buffered']
    #allocation12 [shape = 'u8[16384]{0}', space=vmem, size = 0x4000, scoped, tag = 'input window, operand 10, single buffered']
    #allocation13 [shape = 's32[1]{0}', space=sflag, size = 0x4, scoped, tag = 'scoped memory for tpu_custom_call.1']
    #allocation14 [shape = 'u8[16384]{0}', space=vmem, size = 0x4000, scoped, tag = 'input window, operand 14, single buffered']
    %27 = vsyncpa [#allocation5], 0
    %28 = vsyncpa [#allocation7], 0
    %29 = vsyncpa [#allocation10], 0
    %30 = vsyncpa [#allocation13], 0
    // Predicated region
    $region2: #{tpu_custom_call.1} parent=1 // pred_check
      _
    $region3: #{tpu_custom_call.1} parent=1 // pred_check_branch
      %32 = sbr.rel (0) target = $region5
    $region4: #{tpu_custom_call.1} parent=1 // pred_region
      %s34 = ssub.s32 256, 256
      %35 = vsyncadd [#allocation5], %s34
      %s36 = sshll.u32 [#allocation4], 4
      %s37 = int_to_ptr.vmem [resolvable:$true] %s36
      %42 = dma.hbm_to_vmem [thread:$0]  %s0, 256, %s37, [#allocation5], 128, 128, 8
    $region5: #{tpu_custom_call.1} parent=1 // pred_fallthru
      _
    // Predicated region
    $region6: #{tpu_custom_call.1} parent=1 // pred_check
      _
    $region7: #{tpu_custom_call.1} parent=1 // pred_check_branch
      %44 = sbr.rel (0) target = $region9
    $region8: #{tpu_custom_call.1} parent=1 // pred_region
      _
    $region9: #{tpu_custom_call.1} parent=1 // pred_fallthru
      _
    // Predicated region
    $region10: #{tpu_custom_call.1} parent=1 // pred_check
      _
    $region11: #{tpu_custom_call.1} parent=1 // pred_check_branch
      %46 = sbr.rel (0) target = $region13
    $region12: #{tpu_custom_call.1} parent=1 // pred_region
      %s48 = ssub.s32 512, 512
      %49 = vsyncadd [#allocation7], %s48
      %s50 = sshll.u32 [#allocation6], 4
      %s51 = int_to_ptr.vmem [resolvable:$true] %s50
      %56 = dma.hbm_to_vmem [thread:$0]  %s2, 512, %s51, [#allocation7], 128, 128, 8
    $region13: #{tpu_custom_call.1} parent=1 // pred_fallthru
      _
    // Predicated region
    $region14: #{tpu_custom_call.1} parent=1 // pred_check
      _
    $region15: #{tpu_custom_call.1} parent=1 // pred_check_branch
      %58 = sbr.rel (0) target = $region17
    $region16: #{tpu_custom_call.1} parent=1 // pred_region
      _
    $region17: #{tpu_custom_call.1} parent=1 // pred_fallthru
      _
    // Predicated region
    $region18: #{tpu_custom_call.1} parent=1 // pred_check
      _
    $region19: #{tpu_custom_call.1} parent=1 // pred_check_branch
      %60 = sbr.rel (0) target = $region21
    $region20: #{tpu_custom_call.1} parent=1 // pred_region
      %s62 = ssub.s32 1536, 1536
      %63 = vsyncadd [#allocation7], %s62
      %s64 = sshll.u32 [#allocation8], 4
      %s65 = int_to_ptr.vmem [resolvable:$true] %s64
      %70 = dma.hbm_to_vmem [thread:$0]  %s4, 1536, %s65, [#allocation7], 128, 128, 8
    $region21: #{tpu_custom_call.1} parent=1 // pred_fallthru
      _
    // Predicated region
    $region22: #{tpu_custom_call.1} parent=1 // pred_check
      _
    $region23: #{tpu_custom_call.1} parent=1 // pred_check_branch
      %72 = sbr.rel (0) target = $region25
    $region24: #{tpu_custom_call.1} parent=1 // pred_region
      %s74 = ssub.s32 16, 16
      %75 = vsyncadd [#allocation10], %s74
      %s77 = sshll.u32 [#allocation9], 4
      %s78 = int_to_ptr.vmem [resolvable:$true] %s77
      %80 = dma.hbm_to_vmem [thread:$0]  %s5, 16, %s78, [#allocation10]
    $region25: #{tpu_custom_call.1} parent=1 // pred_fallthru
      _
    // Predicated region
    $region26: #{tpu_custom_call.1} parent=1 // pred_check
      _
    $region27: #{tpu_custom_call.1} parent=1 // pred_check_branch
      %82 = sbr.rel (0) target = $region29
    $region28: #{tpu_custom_call.1} parent=1 // pred_region
      _
    $region29: #{tpu_custom_call.1} parent=1 // pred_fallthru
      _
    // Predicated region
    $region30: #{tpu_custom_call.1} parent=1 // pred_check
      _
    $region31: #{tpu_custom_call.1} parent=1 // pred_check_branch
      %84 = sbr.rel (0) target = $region33
    $region32: #{tpu_custom_call.1} parent=1 // pred_region
      _
    $region33: #{tpu_custom_call.1} parent=1 // pred_fallthru
      _
    // Predicated region
    $region34: #{tpu_custom_call.1} parent=1 // pred_check
      _
    $region35: #{tpu_custom_call.1} parent=1 // pred_check_branch
      %86 = sbr.rel (0) target = $region37
    $region36: #{tpu_custom_call.1} parent=1 // pred_region
      %s88 = ssub.s32 512, 512
      %89 = vsyncadd [#allocation10], %s88
      %s90 = sshll.u32 [#allocation11], 4
      %s91 = int_to_ptr.vmem [resolvable:$true] %s90
      %96 = dma.hbm_to_vmem [thread:$0]  %s8, 512, %s91, [#allocation10], 128, 128, 8
    $region37: #{tpu_custom_call.1} parent=1 // pred_fallthru
      _
    // Predicated region
    $region38: #{tpu_custom_call.1} parent=1 // pred_check
      _
    $region39: #{tpu_custom_call.1} parent=1 // pred_check_branch
      %98 = sbr.rel (0) target = $region41
    $region40: #{tpu_custom_call.1} parent=1 // pred_region
      _
    $region41: #{tpu_custom_call.1} parent=1 // pred_fallthru
      _
    // Predicated region
    $region42: #{tpu_custom_call.1} parent=1 // pred_check
      _
    $region43: #{tpu_custom_call.1} parent=1 // pred_check_branch
      %100 = sbr.rel (0) target = $region45
    $region44: #{tpu_custom_call.1} parent=1 // pred_region
      %s102 = ssub.s32 512, 512
      %103 = vsyncadd [#allocation13], %s102
      %s104 = sshll.u32 [#allocation12], 4
      %s105 = int_to_ptr.vmem [resolvable:$true] %s104
      %110 = dma.hbm_to_vmem [thread:$0]  %s10, 512, %s105, [#allocation13], 128, 128, 8
    $region45: #{tpu_custom_call.1} parent=1 // pred_fallthru
      _
    // Predicated region
    $region46: #{tpu_custom_call.1} parent=1 // pred_check
      _
    $region47: #{tpu_custom_call.1} parent=1 // pred_check_branch
      %112 = sbr.rel (0) target = $region49
    $region48: #{tpu_custom_call.1} parent=1 // pred_region
      _
    $region49: #{tpu_custom_call.1} parent=1 // pred_fallthru
      _
    // Predicated region
    $region50: #{tpu_custom_call.1} parent=1 // pred_check
      _
    $region51: #{tpu_custom_call.1} parent=1 // pred_check_branch
      %114 = sbr.rel (0) target = $region53
    $region52: #{tpu_custom_call.1} parent=1 // pred_region
      _
    $region53: #{tpu_custom_call.1} parent=1 // pred_fallthru
      _
    // Predicated region
    $region54: #{tpu_custom_call.1} parent=1 // pred_check
      _
    $region55: #{tpu_custom_call.1} parent=1 // pred_check_branch
      %116 = sbr.rel (0) target = $region57
    $region56: #{tpu_custom_call.1} parent=1 // pred_region
      _
    $region57: #{tpu_custom_call.1} parent=1 // pred_fallthru
      _
    // Predicated region
    $region58: #{tpu_custom_call.1} parent=1 // pred_check
      _
    $region59: #{tpu_custom_call.1} parent=1 // pred_check_branch
      %118 = sbr.rel (0) target = $region61
    $region60: #{tpu_custom_call.1} parent=1 // pred_region
      %s120 = ssub.s32 512, 512
      %121 = vsyncadd [#allocation13], %s120
      %s122 = sshll.u32 [#allocation14], 4
      %s123 = int_to_ptr.vmem [resolvable:$true] %s122
      %128 = dma.hbm_to_vmem [thread:$0]  %s14, 512, %s123, [#allocation13], 128, 128, 8
    $region61: #{tpu_custom_call.1} parent=1 // pred_fallthru
      _
    // Predicated region
    $region62: #{tpu_custom_call.1} parent=1 // pred_check
      _
    $region63: #{tpu_custom_call.1} parent=1 // pred_check_branch
      %130 = sbr.rel (0) target = $region65
    $region64: #{tpu_custom_call.1} parent=1 // pred_region
      _
    $region65: #{tpu_custom_call.1} parent=1 // pred_fallthru
      _
    // Predicated region
    $region66: #{tpu_custom_call.1} parent=1 // pred_check
      _
    $region67: #{tpu_custom_call.1} parent=1 // pred_check_branch
      %132 = sbr.rel (0) target = $region69
    $region68: #{tpu_custom_call.1} parent=1 // pred_region
      _
    $region69: #{tpu_custom_call.1} parent=1 // pred_fallthru
      _
    // Predicated region
    $region70: #{tpu_custom_call.1} parent=1 // pred_check
      _
    $region71: #{tpu_custom_call.1} parent=1 // pred_check_branch
      %134 = sbr.rel (0) target = $region73
    $region72: #{tpu_custom_call.1} parent=1 // pred_region
      _
    $region73: #{tpu_custom_call.1} parent=1 // pred_fallthru
      _
    // Predicated region
    $region74: #{tpu_custom_call.1} parent=1 // pred_check
      _
    $region75: #{tpu_custom_call.1} parent=1 // pred_check_branch
      %136 = sbr.rel (0) target = $region77
    $region76: #{tpu_custom_call.1} parent=1 // pred_region
      %137 = dma.done [#allocation5], 256
    $region77: #{tpu_custom_call.1} parent=1 // pred_fallthru
      _
    // Predicated region
    $region78: #{tpu_custom_call.1} parent=1 // pred_check
      _
    $region79: #{tpu_custom_call.1} parent=1 // pred_check_branch
      %139 = sbr.rel (0) target = $region81
    $region80: #{tpu_custom_call.1} parent=1 // pred_region
      %140 = dma.done [#allocation7], 512
    $region81: #{tpu_custom_call.1} parent=1 // pred_fallthru
      _
    // Predicated region
    $region82: #{tpu_custom_call.1} parent=1 // pred_check
      _
    $region83: #{tpu_custom_call.1} parent=1 // pred_check_branch
      %142 = sbr.rel (0) target = $region85
    $region84: #{tpu_custom_call.1} parent=1 // pred_region
      %143 = dma.done [#allocation7], 1536
    $region85: #{tpu_custom_call.1} parent=1 // pred_fallthru
      _
    // Predicated region
    $region86: #{tpu_custom_call.1} parent=1 // pred_check
      _
    $region87: #{tpu_custom_call.1} parent=1 // pred_check_branch
      %145 = sbr.rel (0) target = $region89
    $region88: #{tpu_custom_call.1} parent=1 // pred_region
      %146 = dma.done [#allocation10], 16
    $region89: #{tpu_custom_call.1} parent=1 // pred_fallthru
      _
    // Predicated region
    $region90: #{tpu_custom_call.1} parent=1 // pred_check
      _
    $region91: #{tpu_custom_call.1} parent=1 // pred_check_branch
      %148 = sbr.rel (0) target = $region93
    $region92: #{tpu_custom_call.1} parent=1 // pred_region
      %149 = dma.done [#allocation10], 512
    $region93: #{tpu_custom_call.1} parent=1 // pred_fallthru
      _
    // Predicated region
    $region94: #{tpu_custom_call.1} parent=1 // pred_check
      _
    $region95: #{tpu_custom_call.1} parent=1 // pred_check_branch
      %151 = sbr.rel (0) target = $region97
    $region96: #{tpu_custom_call.1} parent=1 // pred_region
      %152 = dma.done [#allocation13], 512
    $region97: #{tpu_custom_call.1} parent=1 // pred_fallthru
      _
    // Predicated region
    $region98: #{tpu_custom_call.1} parent=1 // pred_check
      _
    $region99: #{tpu_custom_call.1} parent=1 // pred_check_branch
      %154 = sbr.rel (0) target = $region101
    $region100: #{tpu_custom_call.1} parent=1 // pred_region
      %155 = dma.done [#allocation13], 512
    $region101: #{tpu_custom_call.1} parent=1 // pred_fallthru
      _
    %v156 = vld [vmem:[%s1] sm:$0xff]
    %v157 = vld [vmem:[%s1 + $0x8] sm:$0xff]
    %v158 = vlaneseq
    %v159 = vshrl.u32 %v158, 7
    %v160 = vld [vmem:[#allocation4] sm:$0xff]
    %v161 = vld [vmem:[#allocation4 + $0x8] sm:$0xff]
    %v162 = vld [vmem:[#allocation6] sm:$0xff]
    %v163 = vld [vmem:[#allocation6 + $0x8] sm:$0xff]
    %v164 = vld [vmem:[#allocation6 + $0x10] sm:$0xff]
    %v165 = vld [vmem:[#allocation6 + $0x18] sm:$0xff]
    %v166 = vld [vmem:[%s3] sm:$0x1]
    %v168 = vlaneseq
    %v169 = vshrl.u32 %v168, 7
    %v170 = vsub.s32 0, %v169
    %v171 = vrot.slane %v166, %v170
    %vm173 = vcmask 261120
    %v175 = vsel %vm173, %v160, 0
    %v178 = vsel %vm173, %v161, 0
    %180 = vmatprep.subr.mxu0 0.0
    %181 = vmatpush1.msra.mxu0 0.0
    %182 = vmatprep.subr.mxu0 0.0
    %183 = vmatpush1.msra.mxu0 0.0
    %184 = vmatprep.subr.mxu0 0.0
    %185 = vmatpush1.msra.mxu0 0.0
    %186 = vmatprep.subr.mxu0 0.0
    %187 = vmatpush1.msra.mxu0 0.0
    %188 = vmatprep.subr.mxu0 0.0
    %189 = vmatpush1.msra.mxu0 0.0
    %190 = vmatprep.subr.mxu0 0.0
    %191 = vmatpush1.msra.mxu0 0.0
    %192 = vmatprep.subr.mxu0 0.0
    %193 = vmatpush1.msra.mxu0 0.0
    %194 = vmatprep.subr.mxu0 0.0
    %195 = vmatpush1.msra.mxu0 0.0
    %196 = vmatprep.subr.mxu0 0.0
    %197 = vmatpush1.msra.mxu0 0.0
    %198 = vmatprep.subr.mxu0 0.0
    %199 = vmatpush1.msra.mxu0 0.0
    %200 = vmatprep.subr.mxu0 0.0
    %201 = vmatpush1.msra.mxu0 0.0
    %202 = vmatprep.subr.mxu0 0.0
    %203 = vmatpush1.msra.mxu0 0.0
    %204 = vmatprep.subr.mxu0 0.0
    %205 = vmatpush1.msra.mxu0 %v165
    %206 = vmatprep.subr.mxu0 0.0
    %207 = vmatpush1.msra.mxu0 %v164
    %208 = vmatprep.subr.mxu0 0.0
    %209 = vmatpush1.msra.mxu0 %v163
    %210 = vmatprep.subr.mxu0 0.0
    %211 = vmatpush1.msra.mxu0 %v162
    %212 = vmatprep.subr.mxu0 0.0
    %213 = vmatpush2.msra.mxu0 0.0
    %214 = vmatprep.subr.mxu0 0.0
    %215 = vmatpush2.msra.mxu0 0.0
    %216 = vmatprep.subr.mxu0 0.0
    %217 = vmatpush2.msra.mxu0 0.0
    %218 = vmatprep.subr.mxu0 0.0
    %219 = vmatpush2.msra.mxu0 0.0
    %220 = vmatprep.subr.mxu0 0.0
    %221 = vmatpush2.msra.mxu0 0.0
    %222 = vmatprep.subr.mxu0 0.0
    %223 = vmatpush2.msra.mxu0 0.0
    %224 = vmatprep.subr.mxu0 0.0
    %225 = vmatpush2.msra.mxu0 0.0
    %226 = vmatprep.subr.mxu0 0.0
    %227 = vmatpush2.msra.mxu0 0.0
    %228 = vmatprep.subr.mxu0 0.0
    %229 = vmatpush2.msra.mxu0 0.0
    %230 = vmatprep.subr.mxu0 0.0
    %231 = vmatpush2.msra.mxu0 0.0
    %232 = vmatprep.subr.mxu0 0.0
    %233 = vmatpush2.msra.mxu0 0.0
    %234 = vmatprep.subr.mxu0 0.0
    %235 = vmatpush2.msra.mxu0 0.0
    %236 = vmatprep.subr.mxu0 0.0
    %237 = vmatpush2.msra.mxu0 0.0
    %238 = vmatprep.subr.mxu0 0.0
    %239 = vmatpush2.msra.mxu0 0.0
    %240 = vmatprep.subr.mxu0 0.0
    %241 = vmatpush2.msra.mxu0 0.0
    %242 = vmatprep.subr.mxu0 0.0
    %243 = vmatpush2.msra.mxu0 0.0
    %244 = vmatprep.mubr.f32.mxu0 0.0
    %245 = vmatmul.mubr.f32.gmra.mxu0 %v175
    %v246 = vpop.f32.mrf.mxu0
    %v247 = vadd.f32 %v171, %v246
    %v248 = vpop.f32.mrf.mxu0
    %249 = vmatprep.mubr.f32.mxu0 0.0
    %250 = vmatmul.mubr.f32.gmra.mxu0 %v178
    %v251 = vpop.f32.mrf.mxu0
    %v252 = vadd.f32 %v171, %v251
    %v253 = vpop.f32.mrf.mxu0
    %254 = vdwg.mxu0
    %256 = vset.pattern.permute.xlu0 0
    %257 = vperm.xlu0 %256, %v156
    %v258 = vpop.permute.xlu0 %257
    %261 = vset.pattern.permute.xlu0 0
    %262 = vperm.xlu0 %261, %v157
    %v263 = vpop.permute.xlu0 %262
    %v265 = vmul.f32 %v247, %v258
    %v266 = vmul.f32 %v252, %v263
    %v267 = vrot.slane %v265, 7
    %v268 = vrot.slane %v266, 7
    %vm269 = vcmp.lt.s32.totalorder %v159, 1
    %v270 = vsel %vm269, %v267, %v268
    %v271 = vsel %vm269, %v268, %v267
    %vm272 = vcmp.ge.s32.totalorder %v159, 1
    %v273 = vsel %vm272, 1, 0
    %v274 = vcvt.s32.f32 %v273
    %v275 = vmul.f32 %v271, %v274
    %v276 = vmul.f32 %v270, %v274
    %v277 = vld [vmem:[#allocation8] sm:$0xff]
    %v278 = vld [vmem:[#allocation8 + $0x8] sm:$0xff]
    %v279 = vld [vmem:[#allocation8 + $0x10] sm:$0xff]
    %v280 = vld [vmem:[#allocation8 + $0x18] sm:$0xff]
    %s281 = scalar_lea.vmem [#allocation8], 32
    %v282 = vld [vmem:[%s281] sm:$0xff]
    %v283 = vld [vmem:[%s281 + $0x8] sm:$0xff]
    %v284 = vld [vmem:[%s281 + $0x10] sm:$0xff]
    %v285 = vld [vmem:[%s281 + $0x18] sm:$0xff]
    %v287 = vsel %vm173, %v265, 0
    %v290 = vsel %vm173, %v266, 0
    %292 = vmatprep.subr.mxu0 0.0
    %293 = vmatpush1.msra.mxu0 0.0
    %294 = vmatprep.subr.mxu0 0.0
    %295 = vmatpush1.msra.mxu0 0.0
    %296 = vmatprep.subr.mxu0 0.0
    %297 = vmatpush1.msra.mxu0 0.0
    %298 = vmatprep.subr.mxu0 0.0
    %299 = vmatpush1.msra.mxu0 0.0
    %300 = vmatprep.subr.mxu0 0.0
    %301 = vmatpush1.msra.mxu0 0.0
    %302 = vmatprep.subr.mxu0 0.0
    %303 = vmatpush1.msra.mxu0 0.0
    %304 = vmatprep.subr.mxu0 0.0
    %305 = vmatpush1.msra.mxu0 0.0
    %306 = vmatprep.subr.mxu0 0.0
    %307 = vmatpush1.msra.mxu0 0.0
    %308 = vmatprep.subr.mxu0 0.0
    %309 = vmatpush1.msra.mxu0 0.0
    %310 = vmatprep.subr.mxu0 0.0
    %311 = vmatpush1.msra.mxu0 0.0
    %312 = vmatprep.subr.mxu0 0.0
    %313 = vmatpush1.msra.mxu0 0.0
    %314 = vmatprep.subr.mxu0 0.0
    %315 = vmatpush1.msra.mxu0 0.0
    %316 = vmatprep.subr.mxu0 0.0
    %317 = vmatpush1.msra.mxu0 %v285
    %318 = vmatprep.subr.mxu0 0.0
    %319 = vmatpush1.msra.mxu0 %v284
    %320 = vmatprep.subr.mxu0 0.0
    %321 = vmatpush1.msra.mxu0 %v283
    %322 = vmatprep.subr.mxu0 0.0
    %323 = vmatpush1.msra.mxu0 %v282
    %324 = vmatprep.subr.mxu0 0.0
    %325 = vmatpush2.msra.mxu0 0.0
    %326 = vmatprep.subr.mxu0 0.0
    %327 = vmatpush2.msra.mxu0 0.0
    %328 = vmatprep.subr.mxu0 0.0
    %329 = vmatpush2.msra.mxu0 0.0
    %330 = vmatprep.subr.mxu0 0.0
    %331 = vmatpush2.msra.mxu0 0.0
    %332 = vmatprep.subr.mxu0 0.0
    %333 = vmatpush2.msra.mxu0 0.0
    %334 = vmatprep.subr.mxu0 0.0
    %335 = vmatpush2.msra.mxu0 0.0
    %336 = vmatprep.subr.mxu0 0.0
    %337 = vmatpush2.msra.mxu0 0.0
    %338 = vmatprep.subr.mxu0 0.0
    %339 = vmatpush2.msra.mxu0 0.0
    %340 = vmatprep.subr.mxu0 0.0
    %341 = vmatpush2.msra.mxu0 0.0
    %342 = vmatprep.subr.mxu0 0.0
    %343 = vmatpush2.msra.mxu0 0.0
    %344 = vmatprep.subr.mxu0 0.0
    %345 = vmatpush2.msra.mxu0 0.0
    %346 = vmatprep.subr.mxu0 0.0
    %347 = vmatpush2.msra.mxu0 0.0
    %348 = vmatprep.subr.mxu0 0.0
    %349 = vmatpush2.msra.mxu0 0.0
    %350 = vmatprep.subr.mxu0 0.0
    %351 = vmatpush2.msra.mxu0 0.0
    %352 = vmatprep.subr.mxu0 0.0
    %353 = vmatpush2.msra.mxu0 0.0
    %354 = vmatprep.subr.mxu0 0.0
    %355 = vmatpush2.msra.mxu0 0.0
    %356 = vmatprep.mubr.f32.mxu0 0.0
    %357 = vmatmul.mubr.f32.gmra.mxu0 %v287
    %v358 = vpop.f32.mrf.mxu0
    %v359 = vadd.f32 0.0, %v358
    %v360 = vpop.f32.mrf.mxu0
    %361 = vmatprep.mubr.f32.mxu0 0.0
    %362 = vmatmul.mubr.f32.gmra.mxu0 %v290
    %v363 = vpop.f32.mrf.mxu0
    %v364 = vadd.f32 0.0, %v363
    %v365 = vpop.f32.mrf.mxu0
    %366 = vdwg.mxu0
    %v368 = vsel %vm173, %v275, 0
    %v371 = vsel %vm173, %v276, 0
    %373 = vmatprep.subr.mxu0 0.0
    %374 = vmatpush1.msra.mxu0 0.0
    %375 = vmatprep.subr.mxu0 0.0
    %376 = vmatpush1.msra.mxu0 0.0
    %377 = vmatprep.subr.mxu0 0.0
    %378 = vmatpush1.msra.mxu0 0.0
    %379 = vmatprep.subr.mxu0 0.0
    %380 = vmatpush1.msra.mxu0 0.0
    %381 = vmatprep.subr.mxu0 0.0
    %382 = vmatpush1.msra.mxu0 0.0
    %383 = vmatprep.subr.mxu0 0.0
    %384 = vmatpush1.msra.mxu0 0.0
    %385 = vmatprep.subr.mxu0 0.0
    %386 = vmatpush1.msra.mxu0 0.0
    %387 = vmatprep.subr.mxu0 0.0
    %388 = vmatpush1.msra.mxu0 0.0
    %389 = vmatprep.subr.mxu0 0.0
    %390 = vmatpush1.msra.mxu0 0.0
    %391 = vmatprep.subr.mxu0 0.0
    %392 = vmatpush1.msra.mxu0 0.0
    %393 = vmatprep.subr.mxu0 0.0
    %394 = vmatpush1.msra.mxu0 0.0
    %395 = vmatprep.subr.mxu0 0.0
    %396 = vmatpush1.msra.mxu0 0.0
    %397 = vmatprep.subr.mxu0 0.0
    %398 = vmatpush1.msra.mxu0 %v280
    %399 = vmatprep.subr.mxu0 0.0
    %400 = vmatpush1.msra.mxu0 %v279
    %401 = vmatprep.subr.mxu0 0.0
    %402 = vmatpush1.msra.mxu0 %v278
    %403 = vmatprep.subr.mxu0 0.0
    %404 = vmatpush1.msra.mxu0 %v277
    %405 = vmatprep.subr.mxu0 0.0
    %406 = vmatpush2.msra.mxu0 0.0
    %407 = vmatprep.subr.mxu0 0.0
    %408 = vmatpush2.msra.mxu0 0.0
    %409 = vmatprep.subr.mxu0 0.0
    %410 = vmatpush2.msra.mxu0 0.0
    %411 = vmatprep.subr.mxu0 0.0
    %412 = vmatpush2.msra.mxu0 0.0
    %413 = vmatprep.subr.mxu0 0.0
    %414 = vmatpush2.msra.mxu0 0.0
    %415 = vmatprep.subr.mxu0 0.0
    %416 = vmatpush2.msra.mxu0 0.0
    %417 = vmatprep.subr.mxu0 0.0
    %418 = vmatpush2.msra.mxu0 0.0
    %419 = vmatprep.subr.mxu0 0.0
    %420 = vmatpush2.msra.mxu0 0.0
    %421 = vmatprep.subr.mxu0 0.0
    %422 = vmatpush2.msra.mxu0 0.0
    %423 = vmatprep.subr.mxu0 0.0
    %424 = vmatpush2.msra.mxu0 0.0
    %425 = vmatprep.subr.mxu0 0.0
    %426 = vmatpush2.msra.mxu0 0.0
    %427 = vmatprep.subr.mxu0 0.0
    %428 = vmatpush2.msra.mxu0 0.0
    %429 = vmatprep.subr.mxu0 0.0
    %430 = vmatpush2.msra.mxu0 0.0
    %431 = vmatprep.subr.mxu0 0.0
    %432 = vmatpush2.msra.mxu0 0.0
    %433 = vmatprep.subr.mxu0 0.0
    %434 = vmatpush2.msra.mxu0 0.0
    %435 = vmatprep.subr.mxu0 0.0
    %436 = vmatpush2.msra.mxu0 0.0
    %437 = vmatprep.mubr.f32.mxu0 0.0
    %438 = vmatmul.mubr.f32.gmra.mxu0 %v368
    %v439 = vpop.f32.mrf.mxu0
    %v440 = vadd.f32 %v359, %v439
    %v441 = vpop.f32.mrf.mxu0
    %442 = vmatprep.mubr.f32.mxu0 0.0
    %443 = vmatmul.mubr.f32.gmra.mxu0 %v371
    %v444 = vpop.f32.mrf.mxu0
    %v445 = vadd.f32 %v364, %v444
    %v446 = vpop.f32.mrf.mxu0
    %447 = vdwg.mxu0
    %v448 = vrot.slane %v265, 1
    %v449 = vrot.slane %v266, 1
    %vm450 = vcmp.lt.s32.totalorder %v159, 7
    %v451 = vsel %vm450, %v448, %v449
    %v452 = vsel %vm450, %v449, %v448
    %v453 = vsel %vm450, 1, 0
    %v454 = vcvt.s32.f32 %v453
    %v455 = vmul.f32 %v451, %v454
    %v456 = vmul.f32 %v452, %v454
    %s457 = scalar_lea.vmem [#allocation8], 64
    %v458 = vld [vmem:[%s457] sm:$0xff]
    %v459 = vld [vmem:[%s457 + $0x8] sm:$0xff]
    %v460 = vld [vmem:[%s457 + $0x10] sm:$0xff]
    %v461 = vld [vmem:[%s457 + $0x18] sm:$0xff]
    %v463 = vsel %vm173, %v455, 0
    %v466 = vsel %vm173, %v456, 0
    %468 = vmatprep.subr.mxu0 0.0
    %469 = vmatpush1.msra.mxu0 0.0
    %470 = vmatprep.subr.mxu0 0.0
    %471 = vmatpush1.msra.mxu0 0.0
    %472 = vmatprep.subr.mxu0 0.0
    %473 = vmatpush1.msra.mxu0 0.0
    %474 = vmatprep.subr.mxu0 0.0
    %475 = vmatpush1.msra.mxu0 0.0
    %476 = vmatprep.subr.mxu0 0.0
    %477 = vmatpush1.msra.mxu0 0.0
    %478 = vmatprep.subr.mxu0 0.0
    %479 = vmatpush1.msra.mxu0 0.0
    %480 = vmatprep.subr.mxu0 0.0
    %481 = vmatpush1.msra.mxu0 0.0
    %482 = vmatprep.subr.mxu0 0.0
    %483 = vmatpush1.msra.mxu0 0.0
    %484 = vmatprep.subr.mxu0 0.0
    %485 = vmatpush1.msra.mxu0 0.0
    %486 = vmatprep.subr.mxu0 0.0
    %487 = vmatpush1.msra.mxu0 0.0
    %488 = vmatprep.subr.mxu0 0.0
    %489 = vmatpush1.msra.mxu0 0.0
    %490 = vmatprep.subr.mxu0 0.0
    %491 = vmatpush1.msra.mxu0 0.0
    %492 = vmatprep.subr.mxu0 0.0
    %493 = vmatpush1.msra.mxu0 %v461
    %494 = vmatprep.subr.mxu0 0.0
    %495 = vmatpush1.msra.mxu0 %v460
    %496 = vmatprep.subr.mxu0 0.0
    %497 = vmatpush1.msra.mxu0 %v459
    %498 = vmatprep.subr.mxu0 0.0
    %499 = vmatpush1.msra.mxu0 %v458
    %500 = vmatprep.subr.mxu0 0.0
    %501 = vmatpush2.msra.mxu0 0.0
    %502 = vmatprep.subr.mxu0 0.0
    %503 = vmatpush2.msra.mxu0 0.0
    %504 = vmatprep.subr.mxu0 0.0
    %505 = vmatpush2.msra.mxu0 0.0
    %506 = vmatprep.subr.mxu0 0.0
    %507 = vmatpush2.msra.mxu0 0.0
    %508 = vmatprep.subr.mxu0 0.0
    %509 = vmatpush2.msra.mxu0 0.0
    %510 = vmatprep.subr.mxu0 0.0
    %511 = vmatpush2.msra.mxu0 0.0
    %512 = vmatprep.subr.mxu0 0.0
    %513 = vmatpush2.msra.mxu0 0.0
    %514 = vmatprep.subr.mxu0 0.0
    %515 = vmatpush2.msra.mxu0 0.0
    %516 = vmatprep.subr.mxu0 0.0
    %517 = vmatpush2.msra.mxu0 0.0
    %518 = vmatprep.subr.mxu0 0.0
    %519 = vmatpush2.msra.mxu0 0.0
    %520 = vmatprep.subr.mxu0 0.0
    %521 = vmatpush2.msra.mxu0 0.0
    %522 = vmatprep.subr.mxu0 0.0
    %523 = vmatpush2.msra.mxu0 0.0
    %524 = vmatprep.subr.mxu0 0.0
    %525 = vmatpush2.msra.mxu0 0.0
    %526 = vmatprep.subr.mxu0 0.0
    %527 = vmatpush2.msra.mxu0 0.0
    %528 = vmatprep.subr.mxu0 0.0
    %529 = vmatpush2.msra.mxu0 0.0
    %530 = vmatprep.subr.mxu0 0.0
    %531 = vmatpush2.msra.mxu0 0.0
    %532 = vmatprep.mubr.f32.mxu0 0.0
    %533 = vmatmul.mubr.f32.gmra.mxu0 %v463
    %v534 = vpop.f32.mrf.mxu0
    %v535 = vadd.f32 0.0, %v534
    %v536 = vpop.f32.mrf.mxu0
    %537 = vmatprep.mubr.f32.mxu0 0.0
    %538 = vmatmul.mubr.f32.gmra.mxu0 %v466
    %v539 = vpop.f32.mrf.mxu0
    %v540 = vadd.f32 0.0, %v539
    %v541 = vpop.f32.mrf.mxu0
    %542 = vdwg.mxu0
    %v543 = vadd.f32 %v440, %v535
    %v544 = vadd.f32 %v445, %v540
    %v545 = vld [vmem:[#allocation9] sm:$0x1]
    %v547 = vlaneseq
    %v548 = vshrl.u32 %v547, 7
    %v549 = vsub.s32 0, %v548
    %v550 = vrot.slane %v545, %v549
    %v552 = vadd.f32 %v543, %v550
    %v553 = vadd.f32 %v544, %v550
    %v554 = vtanh.pop %v552
    %v555 = vtanh.pop %v553
    %v556 = vrot.slane %v554, 7
    %v557 = vrot.slane %v555, 7
    %v558 = vsel %vm269, %v556, %v557
    %v559 = vsel %vm269, %v557, %v556
    %v560 = vmul.f32 %v559, %v274
    %v561 = vmul.f32 %v558, %v274
    %v562 = vld [vmem:[%s6] sm:$0xff]
    %v563 = vld [vmem:[%s6 + $0x8] sm:$0xff]
    %v564 = vld [vmem:[%s6 + $0x10] sm:$0xff]
    %v565 = vld [vmem:[%s6 + $0x18] sm:$0xff]
    %s566 = scalar_lea.vmem %s6, 32
    %v567 = vld [vmem:[%s566] sm:$0xff]
    %v568 = vld [vmem:[%s566 + $0x8] sm:$0xff]
    %v569 = vld [vmem:[%s566 + $0x10] sm:$0xff]
    %v570 = vld [vmem:[%s566 + $0x18] sm:$0xff]
    %v572 = vsel %vm173, %v554, 0
    %v575 = vsel %vm173, %v555, 0
    %577 = vmatprep.subr.mxu0 0.0
    %578 = vmatpush1.msra.mxu0 0.0
    %579 = vmatprep.subr.mxu0 0.0
    %580 = vmatpush1.msra.mxu0 0.0
    %581 = vmatprep.subr.mxu0 0.0
    %582 = vmatpush1.msra.mxu0 0.0
    %583 = vmatprep.subr.mxu0 0.0
    %584 = vmatpush1.msra.mxu0 0.0
    %585 = vmatprep.subr.mxu0 0.0
    %586 = vmatpush1.msra.mxu0 0.0
    %587 = vmatprep.subr.mxu0 0.0
    %588 = vmatpush1.msra.mxu0 0.0
    %589 = vmatprep.subr.mxu0 0.0
    %590 = vmatpush1.msra.mxu0 0.0
    %591 = vmatprep.subr.mxu0 0.0
    %592 = vmatpush1.msra.mxu0 0.0
    %593 = vmatprep.subr.mxu0 0.0
    %594 = vmatpush1.msra.mxu0 0.0
    %595 = vmatprep.subr.mxu0 0.0
    %596 = vmatpush1.msra.mxu0 0.0
    %597 = vmatprep.subr.mxu0 0.0
    %598 = vmatpush1.msra.mxu0 0.0
    %599 = vmatprep.subr.mxu0 0.0
    %600 = vmatpush1.msra.mxu0 0.0
    %601 = vmatprep.subr.mxu0 0.0
    %602 = vmatpush1.msra.mxu0 %v570
    %603 = vmatprep.subr.mxu0 0.0
    %604 = vmatpush1.msra.mxu0 %v569
    %605 = vmatprep.subr.mxu0 0.0
    %606 = vmatpush1.msra.mxu0 %v568
    %607 = vmatprep.subr.mxu0 0.0
    %608 = vmatpush1.msra.mxu0 %v567
    %609 = vmatprep.subr.mxu0 0.0
    %610 = vmatpush2.msra.mxu0 0.0
    %611 = vmatprep.subr.mxu0 0.0
    %612 = vmatpush2.msra.mxu0 0.0
    %613 = vmatprep.subr.mxu0 0.0
    %614 = vmatpush2.msra.mxu0 0.0
    %615 = vmatprep.subr.mxu0 0.0
    %616 = vmatpush2.msra.mxu0 0.0
    %617 = vmatprep.subr.mxu0 0.0
    %618 = vmatpush2.msra.mxu0 0.0
    %619 = vmatprep.subr.mxu0 0.0
    %620 = vmatpush2.msra.mxu0 0.0
    %621 = vmatprep.subr.mxu0 0.0
    %622 = vmatpush2.msra.mxu0 0.0
    %623 = vmatprep.subr.mxu0 0.0
    %624 = vmatpush2.msra.mxu0 0.0
    %625 = vmatprep.subr.mxu0 0.0
    %626 = vmatpush2.msra.mxu0 0.0
    %627 = vmatprep.subr.mxu0 0.0
    %628 = vmatpush2.msra.mxu0 0.0
    %629 = vmatprep.subr.mxu0 0.0
    %630 = vmatpush2.msra.mxu0 0.0
    %631 = vmatprep.subr.mxu0 0.0
    %632 = vmatpush2.msra.mxu0 0.0
    %633 = vmatprep.subr.mxu0 0.0
    %634 = vmatpush2.msra.mxu0 0.0
    %635 = vmatprep.subr.mxu0 0.0
    %636 = vmatpush2.msra.mxu0 0.0
    %637 = vmatprep.subr.mxu0 0.0
    %638 = vmatpush2.msra.mxu0 0.0
    %639 = vmatprep.subr.mxu0 0.0
    %640 = vmatpush2.msra.mxu0 0.0
    %641 = vmatprep.mubr.f32.mxu0 0.0
    %642 = vmatmul.mubr.f32.gmra.mxu0 %v572
    %v643 = vpop.f32.mrf.mxu0
    %v644 = vadd.f32 0.0, %v643
    %v645 = vpop.f32.mrf.mxu0
    %646 = vmatprep.mubr.f32.mxu0 0.0
    %647 = vmatmul.mubr.f32.gmra.mxu0 %v575
    %v648 = vpop.f32.mrf.mxu0
    %v649 = vadd.f32 0.0, %v648
    %v650 = vpop.f32.mrf.mxu0
    %651 = vdwg.mxu0
    %v653 = vsel %vm173, %v560, 0
    %v656 = vsel %vm173, %v561, 0
    %658 = vmatprep.subr.mxu0 0.0
    %659 = vmatpush1.msra.mxu0 0.0
    %660 = vmatprep.subr.mxu0 0.0
    %661 = vmatpush1.msra.mxu0 0.0
    %662 = vmatprep.subr.mxu0 0.0
    %663 = vmatpush1.msra.mxu0 0.0
    %664 = vmatprep.subr.mxu0 0.0
    %665 = vmatpush1.msra.mxu0 0.0
    %666 = vmatprep.subr.mxu0 0.0
    %667 = vmatpush1.msra.mxu0 0.0
    %668 = vmatprep.subr.mxu0 0.0
    %669 = vmatpush1.msra.mxu0 0.0
    %670 = vmatprep.subr.mxu0 0.0
    %671 = vmatpush1.msra.mxu0 0.0
    %672 = vmatprep.subr.mxu0 0.0
    %673 = vmatpush1.msra.mxu0 0.0
    %674 = vmatprep.subr.mxu0 0.0
    %675 = vmatpush1.msra.mxu0 0.0
    %676 = vmatprep.subr.mxu0 0.0
    %677 = vmatpush1.msra.mxu0 0.0
    %678 = vmatprep.subr.mxu0 0.0
    %679 = vmatpush1.msra.mxu0 0.0
    %680 = vmatprep.subr.mxu0 0.0
    %681 = vmatpush1.msra.mxu0 0.0
    %682 = vmatprep.subr.mxu0 0.0
    %683 = vmatpush1.msra.mxu0 %v565
    %684 = vmatprep.subr.mxu0 0.0
    %685 = vmatpush1.msra.mxu0 %v564
    %686 = vmatprep.subr.mxu0 0.0
    %687 = vmatpush1.msra.mxu0 %v563
    %688 = vmatprep.subr.mxu0 0.0
    %689 = vmatpush1.msra.mxu0 %v562
    %690 = vmatprep.subr.mxu0 0.0
    %691 = vmatpush2.msra.mxu0 0.0
    %692 = vmatprep.subr.mxu0 0.0
    %693 = vmatpush2.msra.mxu0 0.0
    %694 = vmatprep.subr.mxu0 0.0
    %695 = vmatpush2.msra.mxu0 0.0
    %696 = vmatprep.subr.mxu0 0.0
    %697 = vmatpush2.msra.mxu0 0.0
    %698 = vmatprep.subr.mxu0 0.0
    %699 = vmatpush2.msra.mxu0 0.0
    %700 = vmatprep.subr.mxu0 0.0
    %701 = vmatpush2.msra.mxu0 0.0
    %702 = vmatprep.subr.mxu0 0.0
    %703 = vmatpush2.msra.mxu0 0.0
    %704 = vmatprep.subr.mxu0 0.0
    %705 = vmatpush2.msra.mxu0 0.0
    %706 = vmatprep.subr.mxu0 0.0
    %707 = vmatpush2.msra.mxu0 0.0
    %708 = vmatprep.subr.mxu0 0.0
    %709 = vmatpush2.msra.mxu0 0.0
    %710 = vmatprep.subr.mxu0 0.0
    %711 = vmatpush2.msra.mxu0 0.0
    %712 = vmatprep.subr.mxu0 0.0
    %713 = vmatpush2.msra.mxu0 0.0
    %714 = vmatprep.subr.mxu0 0.0
    %715 = vmatpush2.msra.mxu0 0.0
    %716 = vmatprep.subr.mxu0 0.0
    %717 = vmatpush2.msra.mxu0 0.0
    %718 = vmatprep.subr.mxu0 0.0
    %719 = vmatpush2.msra.mxu0 0.0
    %720 = vmatprep.subr.mxu0 0.0
    %721 = vmatpush2.msra.mxu0 0.0
    %722 = vmatprep.mubr.f32.mxu0 0.0
    %723 = vmatmul.mubr.f32.gmra.mxu0 %v653
    %v724 = vpop.f32.mrf.mxu0
    %v725 = vadd.f32 %v644, %v724
    %v726 = vpop.f32.mrf.mxu0
    %727 = vmatprep.mubr.f32.mxu0 0.0
    %728 = vmatmul.mubr.f32.gmra.mxu0 %v656
    %v729 = vpop.f32.mrf.mxu0
    %v730 = vadd.f32 %v649, %v729
    %v731 = vpop.f32.mrf.mxu0
    %732 = vdwg.mxu0
    %v733 = vrot.slane %v554, 1
    %v734 = vrot.slane %v555, 1
    %v735 = vsel %vm450, %v733, %v734
    %v736 = vsel %vm450, %v734, %v733
    %v737 = vmul.f32 %v735, %v454
    %v738 = vmul.f32 %v736, %v454
    %s739 = scalar_lea.vmem %s6, 64
    %v740 = vld [vmem:[%s739] sm:$0xff]
    %v741 = vld [vmem:[%s739 + $0x8] sm:$0xff]
    %v742 = vld [vmem:[%s739 + $0x10] sm:$0xff]
    %v743 = vld [vmem:[%s739 + $0x18] sm:$0xff]
    %v745 = vsel %vm173, %v737, 0
    %v748 = vsel %vm173, %v738, 0
    %750 = vmatprep.subr.mxu0 0.0
    %751 = vmatpush1.msra.mxu0 0.0
    %752 = vmatprep.subr.mxu0 0.0
    %753 = vmatpush1.msra.mxu0 0.0
    %754 = vmatprep.subr.mxu0 0.0
    %755 = vmatpush1.msra.mxu0 0.0
    %756 = vmatprep.subr.mxu0 0.0
    %757 = vmatpush1.msra.mxu0 0.0
    %758 = vmatprep.subr.mxu0 0.0
    %759 = vmatpush1.msra.mxu0 0.0
    %760 = vmatprep.subr.mxu0 0.0
    %761 = vmatpush1.msra.mxu0 0.0
    %762 = vmatprep.subr.mxu0 0.0
    %763 = vmatpush1.msra.mxu0 0.0
    %764 = vmatprep.subr.mxu0 0.0
    %765 = vmatpush1.msra.mxu0 0.0
    %766 = vmatprep.subr.mxu0 0.0
    %767 = vmatpush1.msra.mxu0 0.0
    %768 = vmatprep.subr.mxu0 0.0
    %769 = vmatpush1.msra.mxu0 0.0
    %770 = vmatprep.subr.mxu0 0.0
    %771 = vmatpush1.msra.mxu0 0.0
    %772 = vmatprep.subr.mxu0 0.0
    %773 = vmatpush1.msra.mxu0 0.0
    %774 = vmatprep.subr.mxu0 0.0
    %775 = vmatpush1.msra.mxu0 %v743
    %776 = vmatprep.subr.mxu0 0.0
    %777 = vmatpush1.msra.mxu0 %v742
    %778 = vmatprep.subr.mxu0 0.0
    %779 = vmatpush1.msra.mxu0 %v741
    %780 = vmatprep.subr.mxu0 0.0
    %781 = vmatpush1.msra.mxu0 %v740
    %782 = vmatprep.subr.mxu0 0.0
    %783 = vmatpush2.msra.mxu0 0.0
    %784 = vmatprep.subr.mxu0 0.0
    %785 = vmatpush2.msra.mxu0 0.0
    %786 = vmatprep.subr.mxu0 0.0
    %787 = vmatpush2.msra.mxu0 0.0
    %788 = vmatprep.subr.mxu0 0.0
    %789 = vmatpush2.msra.mxu0 0.0
    %790 = vmatprep.subr.mxu0 0.0
    %791 = vmatpush2.msra.mxu0 0.0
    %792 = vmatprep.subr.mxu0 0.0
    %793 = vmatpush2.msra.mxu0 0.0
    %794 = vmatprep.subr.mxu0 0.0
    %795 = vmatpush2.msra.mxu0 0.0
    %796 = vmatprep.subr.mxu0 0.0
    %797 = vmatpush2.msra.mxu0 0.0
    %798 = vmatprep.subr.mxu0 0.0
    %799 = vmatpush2.msra.mxu0 0.0
    %800 = vmatprep.subr.mxu0 0.0
    %801 = vmatpush2.msra.mxu0 0.0
    %802 = vmatprep.subr.mxu0 0.0
    %803 = vmatpush2.msra.mxu0 0.0
    %804 = vmatprep.subr.mxu0 0.0
    %805 = vmatpush2.msra.mxu0 0.0
    %806 = vmatprep.subr.mxu0 0.0
    %807 = vmatpush2.msra.mxu0 0.0
    %808 = vmatprep.subr.mxu0 0.0
    %809 = vmatpush2.msra.mxu0 0.0
    %810 = vmatprep.subr.mxu0 0.0
    %811 = vmatpush2.msra.mxu0 0.0
    %812 = vmatprep.subr.mxu0 0.0
    %813 = vmatpush2.msra.mxu0 0.0
    %814 = vmatprep.mubr.f32.mxu0 0.0
    %815 = vmatmul.mubr.f32.gmra.mxu0 %v745
    %v816 = vpop.f32.mrf.mxu0
    %v817 = vadd.f32 0.0, %v816
    %v818 = vpop.f32.mrf.mxu0
    %819 = vmatprep.mubr.f32.mxu0 0.0
    %820 = vmatmul.mubr.f32.gmra.mxu0 %v748
    %v821 = vpop.f32.mrf.mxu0
    %v822 = vadd.f32 0.0, %v821
    %v823 = vpop.f32.mrf.mxu0
    %824 = vdwg.mxu0
    %v825 = vadd.f32 %v725, %v817
    %v826 = vadd.f32 %v730, %v822
    %v827 = vld [vmem:[%s7] sm:$0x1]
    %v829 = vlaneseq
    %v830 = vshrl.u32 %v829, 7
    %v831 = vsub.s32 0, %v830
    %v832 = vrot.slane %v827, %v831
    %v834 = vadd.f32 %v825, %v832
    %v835 = vadd.f32 %v826, %v832
    %v836 = vadd.f32 %v265, %v834
    %v837 = vadd.f32 %v266, %v835
    %v838 = vtanh.pop %v836
    %v839 = vtanh.pop %v837
    %v840 = vmul.f32 %v838, %v258
    %v841 = vmul.f32 %v839, %v263
    %v842 = vld [vmem:[#allocation11] sm:$0xff]
    %v843 = vld [vmem:[#allocation11 + $0x8] sm:$0xff]
    %v844 = vld [vmem:[#allocation11 + $0x10] sm:$0xff]
    %v845 = vld [vmem:[#allocation11 + $0x18] sm:$0xff]
    %v846 = vld [vmem:[%s9] sm:$0x1]
    %v848 = vlaneseq
    %v849 = vshrl.u32 %v848, 7
    %v850 = vsub.s32 0, %v849
    %v851 = vrot.slane %v846, %v850
    %v854 = vsel %vm173, %v840, 0
    %v857 = vsel %vm173, %v841, 0
    %859 = vmatprep.subr.mxu0 0.0
    %860 = vmatpush1.msra.mxu0 0.0
    %861 = vmatprep.subr.mxu0 0.0
    %862 = vmatpush1.msra.mxu0 0.0
    %863 = vmatprep.subr.mxu0 0.0
    %864 = vmatpush1.msra.mxu0 0.0
    %865 = vmatprep.subr.mxu0 0.0
    %866 = vmatpush1.msra.mxu0 0.0
    %867 = vmatprep.subr.mxu0 0.0
    %868 = vmatpush1.msra.mxu0 0.0
    %869 = vmatprep.subr.mxu0 0.0
    %870 = vmatpush1.msra.mxu0 0.0
    %871 = vmatprep.subr.mxu0 0.0
    %872 = vmatpush1.msra.mxu0 0.0
    %873 = vmatprep.subr.mxu0 0.0
    %874 = vmatpush1.msra.mxu0 0.0
    %875 = vmatprep.subr.mxu0 0.0
    %876 = vmatpush1.msra.mxu0 0.0
    %877 = vmatprep.subr.mxu0 0.0
    %878 = vmatpush1.msra.mxu0 0.0
    %879 = vmatprep.subr.mxu0 0.0
    %880 = vmatpush1.msra.mxu0 0.0
    %881 = vmatprep.subr.mxu0 0.0
    %882 = vmatpush1.msra.mxu0 0.0
    %883 = vmatprep.subr.mxu0 0.0
    %884 = vmatpush1.msra.mxu0 %v845
    %885 = vmatprep.subr.mxu0 0.0
    %886 = vmatpush1.msra.mxu0 %v844
    %887 = vmatprep.subr.mxu0 0.0
    %888 = vmatpush1.msra.mxu0 %v843
    %889 = vmatprep.subr.mxu0 0.0
    %890 = vmatpush1.msra.mxu0 %v842
    %891 = vmatprep.subr.mxu0 0.0
    %892 = vmatpush2.msra.mxu0 0.0
    %893 = vmatprep.subr.mxu0 0.0
    %894 = vmatpush2.msra.mxu0 0.0
    %895 = vmatprep.subr.mxu0 0.0
    %896 = vmatpush2.msra.mxu0 0.0
    %897 = vmatprep.subr.mxu0 0.0
    %898 = vmatpush2.msra.mxu0 0.0
    %899 = vmatprep.subr.mxu0 0.0
    %900 = vmatpush2.msra.mxu0 0.0
    %901 = vmatprep.subr.mxu0 0.0
    %902 = vmatpush2.msra.mxu0 0.0
    %903 = vmatprep.subr.mxu0 0.0
    %904 = vmatpush2.msra.mxu0 0.0
    %905 = vmatprep.subr.mxu0 0.0
    %906 = vmatpush2.msra.mxu0 0.0
    %907 = vmatprep.subr.mxu0 0.0
    %908 = vmatpush2.msra.mxu0 0.0
    %909 = vmatprep.subr.mxu0 0.0
    %910 = vmatpush2.msra.mxu0 0.0
    %911 = vmatprep.subr.mxu0 0.0
    %912 = vmatpush2.msra.mxu0 0.0
    %913 = vmatprep.subr.mxu0 0.0
    %914 = vmatpush2.msra.mxu0 0.0
    %915 = vmatprep.subr.mxu0 0.0
    %916 = vmatpush2.msra.mxu0 0.0
    %917 = vmatprep.subr.mxu0 0.0
    %918 = vmatpush2.msra.mxu0 0.0
    %919 = vmatprep.subr.mxu0 0.0
    %920 = vmatpush2.msra.mxu0 0.0
    %921 = vmatprep.subr.mxu0 0.0
    %922 = vmatpush2.msra.mxu0 0.0
    %923 = vmatprep.mubr.f32.mxu0 0.0
    %924 = vmatmul.mubr.f32.gmra.mxu0 %v854
    %v925 = vpop.f32.mrf.mxu0
    %v926 = vadd.f32 %v851, %v925
    %v927 = vpop.f32.mrf.mxu0
    %928 = vmatprep.mubr.f32.mxu0 0.0
    %929 = vmatmul.mubr.f32.gmra.mxu0 %v857
    %v930 = vpop.f32.mrf.mxu0
    %v931 = vadd.f32 %v851, %v930
    %v932 = vpop.f32.mrf.mxu0
    %933 = vdwg.mxu0
    %v934 = vmax.f32 %v926, 0.0
    %v935 = vmax.f32 %v931, 0.0
    %v936 = vsel %vm173, %v934, -inf
    %v937 = vrot.slane %v936, 4
    %v938 = vmax.f32 %v936, %v937
    %v939 = vrot.slane %v938, 2
    %v940 = vmax.f32 %v938, %v939
    %v941 = vrot.slane %v940, 1
    %v942 = vmax.f32 %v940, %v941
    %v943 = vsel %vm173, %v935, -inf
    %v944 = vrot.slane %v943, 4
    %v945 = vmax.f32 %v943, %v944
    %v946 = vrot.slane %v945, 2
    %v947 = vmax.f32 %v945, %v946
    %v948 = vrot.slane %v947, 1
    %v949 = vmax.f32 %v947, %v948
    %v950 = vld [vmem:[#allocation14] sm:$0xff]
    %v951 = vld [vmem:[#allocation14 + $0x8] sm:$0xff]
    %v952 = vld [vmem:[#allocation14 + $0x10] sm:$0xff]
    %v953 = vld [vmem:[#allocation14 + $0x18] sm:$0xff]
    %v954 = vld [vmem:[%s15] sm:$0x1]
    %v956 = vlaneseq
    %v957 = vshrl.u32 %v956, 7
    %v958 = vsub.s32 0, %v957
    %v959 = vrot.slane %v954, %v958
    %v963 = vrot.slane %v252, 7
    %vm964 = vcmask 1041409
    %v965 = vsel %vm964, %v963, %v247
    %v966 = vsel %vm173, %v965, 0
    %968 = vmatprep.subr.mxu0 0.0
    %969 = vmatpush1.msra.mxu0 0.0
    %970 = vmatprep.subr.mxu0 0.0
    %971 = vmatpush1.msra.mxu0 0.0
    %972 = vmatprep.subr.mxu0 0.0
    %973 = vmatpush1.msra.mxu0 0.0
    %974 = vmatprep.subr.mxu0 0.0
    %975 = vmatpush1.msra.mxu0 0.0
    %976 = vmatprep.subr.mxu0 0.0
    %977 = vmatpush1.msra.mxu0 0.0
    %978 = vmatprep.subr.mxu0 0.0
    %979 = vmatpush1.msra.mxu0 0.0
    %980 = vmatprep.subr.mxu0 0.0
    %981 = vmatpush1.msra.mxu0 0.0
    %982 = vmatprep.subr.mxu0 0.0
    %983 = vmatpush1.msra.mxu0 0.0
    %984 = vmatprep.subr.mxu0 0.0
    %985 = vmatpush1.msra.mxu0 0.0
    %986 = vmatprep.subr.mxu0 0.0
    %987 = vmatpush1.msra.mxu0 0.0
    %988 = vmatprep.subr.mxu0 0.0
    %989 = vmatpush1.msra.mxu0 0.0
    %990 = vmatprep.subr.mxu0 0.0
    %991 = vmatpush1.msra.mxu0 0.0
    %992 = vmatprep.subr.mxu0 0.0
    %993 = vmatpush1.msra.mxu0 %v953
    %994 = vmatprep.subr.mxu0 0.0
    %995 = vmatpush1.msra.mxu0 %v952
    %996 = vmatprep.subr.mxu0 0.0
    %997 = vmatpush1.msra.mxu0 %v951
    %998 = vmatprep.subr.mxu0 0.0
    %999 = vmatpush1.msra.mxu0 %v950
    %1000 = vmatprep.subr.mxu0 0.0
    %1001 = vmatpush2.msra.mxu0 0.0
    %1002 = vmatprep.subr.mxu0 0.0
    %1003 = vmatpush2.msra.mxu0 0.0
    %1004 = vmatprep.subr.mxu0 0.0
    %1005 = vmatpush2.msra.mxu0 0.0
    %1006 = vmatprep.subr.mxu0 0.0
    %1007 = vmatpush2.msra.mxu0 0.0
    %1008 = vmatprep.subr.mxu0 0.0
    %1009 = vmatpush2.msra.mxu0 0.0
    %1010 = vmatprep.subr.mxu0 0.0
    %1011 = vmatpush2.msra.mxu0 0.0
    %1012 = vmatprep.subr.mxu0 0.0
    %1013 = vmatpush2.msra.mxu0 0.0
    %1014 = vmatprep.subr.mxu0 0.0
    %1015 = vmatpush2.msra.mxu0 0.0
    %1016 = vmatprep.subr.mxu0 0.0
    %1017 = vmatpush2.msra.mxu0 0.0
    %1018 = vmatprep.subr.mxu0 0.0
    %1019 = vmatpush2.msra.mxu0 0.0
    %1020 = vmatprep.subr.mxu0 0.0
    %1021 = vmatpush2.msra.mxu0 0.0
    %1022 = vmatprep.subr.mxu0 0.0
    %1023 = vmatpush2.msra.mxu0 0.0
    %1024 = vmatprep.subr.mxu0 0.0
    %1025 = vmatpush2.msra.mxu0 0.0
    %1026 = vmatprep.subr.mxu0 0.0
    %1027 = vmatpush2.msra.mxu0 0.0
    %1028 = vmatprep.subr.mxu0 0.0
    %1029 = vmatpush2.msra.mxu0 0.0
    %1030 = vmatprep.subr.mxu0 0.0
    %1031 = vmatpush2.msra.mxu0 0.0
    %1032 = vmatprep.mubr.f32.mxu0 0.0
    %1033 = vmatmul.mubr.f32.gmra.mxu0 %v966
    %v1034 = vpop.f32.mrf.mxu0
    %v1035 = vadd.f32 %v959, %v1034
    %v1036 = vpop.f32.mrf.mxu0
    %1037 = vdwg.mxu0
    %v1038 = vtanh.pop %v1035
    %v1039 = vld [vmem:[%s16] sm:$0xff]
    %v1040 = vld [vmem:[%s16 + $0x8] sm:$0xff]
    %v1041 = vld [vmem:[%s16 + $0x10] sm:$0xff]
    %v1042 = vld [vmem:[%s16 + $0x18] sm:$0xff]
    %v1043 = vld [vmem:[#allocation3] sm:$0x1]
    %v1045 = vlaneseq
    %v1046 = vshrl.u32 %v1045, 7
    %v1047 = vsub.s32 0, %v1046
    %v1048 = vrot.slane %v1043, %v1047
    %v1051 = vsel %vm173, %v1038, 0
    %1053 = vmatprep.subr.mxu0 0.0
    %1054 = vmatpush1.msra.mxu0 0.0
    %1055 = vmatprep.subr.mxu0 0.0
    %1056 = vmatpush1.msra.mxu0 0.0
    %1057 = vmatprep.subr.mxu0 0.0
    %1058 = vmatpush1.msra.mxu0 0.0
    %1059 = vmatprep.subr.mxu0 0.0
    %1060 = vmatpush1.msra.mxu0 0.0
    %1061 = vmatprep.subr.mxu0 0.0
    %1062 = vmatpush1.msra.mxu0 0.0
    %1063 = vmatprep.subr.mxu0 0.0
    %1064 = vmatpush1.msra.mxu0 0.0
    %1065 = vmatprep.subr.mxu0 0.0
    %1066 = vmatpush1.msra.mxu0 0.0
    %1067 = vmatprep.subr.mxu0 0.0
    %1068 = vmatpush1.msra.mxu0 0.0
    %1069 = vmatprep.subr.mxu0 0.0
    %1070 = vmatpush1.msra.mxu0 0.0
    %1071 = vmatprep.subr.mxu0 0.0
    %1072 = vmatpush1.msra.mxu0 0.0
    %1073 = vmatprep.subr.mxu0 0.0
    %1074 = vmatpush1.msra.mxu0 0.0
    %1075 = vmatprep.subr.mxu0 0.0
    %1076 = vmatpush1.msra.mxu0 0.0
    %1077 = vmatprep.subr.mxu0 0.0
    %1078 = vmatpush1.msra.mxu0 %v1042
    %1079 = vmatprep.subr.mxu0 0.0
    %1080 = vmatpush1.msra.mxu0 %v1041
    %1081 = vmatprep.subr.mxu0 0.0
    %1082 = vmatpush1.msra.mxu0 %v1040
    %1083 = vmatprep.subr.mxu0 0.0
    %1084 = vmatpush1.msra.mxu0 %v1039
    %1085 = vmatprep.subr.mxu0 0.0
    %1086 = vmatpush2.msra.mxu0 0.0
    %1087 = vmatprep.subr.mxu0 0.0
    %1088 = vmatpush2.msra.mxu0 0.0
    %1089 = vmatprep.subr.mxu0 0.0
    %1090 = vmatpush2.msra.mxu0 0.0
    %1091 = vmatprep.subr.mxu0 0.0
    %1092 = vmatpush2.msra.mxu0 0.0
    %1093 = vmatprep.subr.mxu0 0.0
    %1094 = vmatpush2.msra.mxu0 0.0
    %1095 = vmatprep.subr.mxu0 0.0
    %1096 = vmatpush2.msra.mxu0 0.0
    %1097 = vmatprep.subr.mxu0 0.0
    %1098 = vmatpush2.msra.mxu0 0.0
    %1099 = vmatprep.subr.mxu0 0.0
    %1100 = vmatpush2.msra.mxu0 0.0
    %1101 = vmatprep.subr.mxu0 0.0
    %1102 = vmatpush2.msra.mxu0 0.0
    %1103 = vmatprep.subr.mxu0 0.0
    %1104 = vmatpush2.msra.mxu0 0.0
    %1105 = vmatprep.subr.mxu0 0.0
    %1106 = vmatpush2.msra.mxu0 0.0
    %1107 = vmatprep.subr.mxu0 0.0
    %1108 = vmatpush2.msra.mxu0 0.0
    %1109 = vmatprep.subr.mxu0 0.0
    %1110 = vmatpush2.msra.mxu0 0.0
    %1111 = vmatprep.subr.mxu0 0.0
    %1112 = vmatpush2.msra.mxu0 0.0
    %1113 = vmatprep.subr.mxu0 0.0
    %1114 = vmatpush2.msra.mxu0 0.0
    %1115 = vmatprep.subr.mxu0 0.0
    %1116 = vmatpush2.msra.mxu0 0.0
    %1117 = vmatprep.mubr.f32.mxu0 0.0
    %1118 = vmatmul.mubr.f32.gmra.mxu0 %v1051
    %v1119 = vpop.f32.mrf.mxu0
    %v1120 = vadd.f32 %v1048, %v1119
    %v1121 = vpop.f32.mrf.mxu0
    %1122 = vdwg.mxu0
    %v1123 = vld [vmem:[#allocation12] sm:$0xff]
    %v1124 = vld [vmem:[#allocation12 + $0x8] sm:$0xff]
    %v1125 = vld [vmem:[#allocation12 + $0x10] sm:$0xff]
    %v1126 = vld [vmem:[#allocation12 + $0x18] sm:$0xff]
    %v1127 = vld [vmem:[%s11] sm:$0x1]
    %v1129 = vlaneseq
    %v1130 = vshrl.u32 %v1129, 7
    %v1131 = vsub.s32 0, %v1130
    %v1132 = vrot.slane %v1127, %v1131
    %v1136 = vsel %vm964, %v949, %v942
    %v1137 = vsel %vm173, %v1136, 0
    %1139 = vmatprep.subr.mxu0 0.0
    %1140 = vmatpush1.msra.mxu0 0.0
    %1141 = vmatprep.subr.mxu0 0.0
    %1142 = vmatpush1.msra.mxu0 0.0
    %1143 = vmatprep.subr.mxu0 0.0
    %1144 = vmatpush1.msra.mxu0 0.0
    %1145 = vmatprep.subr.mxu0 0.0
    %1146 = vmatpush1.msra.mxu0 0.0
    %1147 = vmatprep.subr.mxu0 0.0
    %1148 = vmatpush1.msra.mxu0 0.0
    %1149 = vmatprep.subr.mxu0 0.0
    %1150 = vmatpush1.msra.mxu0 0.0
    %1151 = vmatprep.subr.mxu0 0.0
    %1152 = vmatpush1.msra.mxu0 0.0
    %1153 = vmatprep.subr.mxu0 0.0
    %1154 = vmatpush1.msra.mxu0 0.0
    %1155 = vmatprep.subr.mxu0 0.0
    %1156 = vmatpush1.msra.mxu0 0.0
    %1157 = vmatprep.subr.mxu0 0.0
    %1158 = vmatpush1.msra.mxu0 0.0
    %1159 = vmatprep.subr.mxu0 0.0
    %1160 = vmatpush1.msra.mxu0 0.0
    %1161 = vmatprep.subr.mxu0 0.0
    %1162 = vmatpush1.msra.mxu0 0.0
    %1163 = vmatprep.subr.mxu0 0.0
    %1164 = vmatpush1.msra.mxu0 %v1126
    %1165 = vmatprep.subr.mxu0 0.0
    %1166 = vmatpush1.msra.mxu0 %v1125
    %1167 = vmatprep.subr.mxu0 0.0
    %1168 = vmatpush1.msra.mxu0 %v1124
    %1169 = vmatprep.subr.mxu0 0.0
    %1170 = vmatpush1.msra.mxu0 %v1123
    %1171 = vmatprep.subr.mxu0 0.0
    %1172 = vmatpush2.msra.mxu0 0.0
    %1173 = vmatprep.subr.mxu0 0.0
    %1174 = vmatpush2.msra.mxu0 0.0
    %1175 = vmatprep.subr.mxu0 0.0
    %1176 = vmatpush2.msra.mxu0 0.0
    %1177 = vmatprep.subr.mxu0 0.0
    %1178 = vmatpush2.msra.mxu0 0.0
    %1179 = vmatprep.subr.mxu0 0.0
    %1180 = vmatpush2.msra.mxu0 0.0
    %1181 = vmatprep.subr.mxu0 0.0
    %1182 = vmatpush2.msra.mxu0 0.0
    %1183 = vmatprep.subr.mxu0 0.0
    %1184 = vmatpush2.msra.mxu0 0.0
    %1185 = vmatprep.subr.mxu0 0.0
    %1186 = vmatpush2.msra.mxu0 0.0
    %1187 = vmatprep.subr.mxu0 0.0
    %1188 = vmatpush2.msra.mxu0 0.0
    %1189 = vmatprep.subr.mxu0 0.0
    %1190 = vmatpush2.msra.mxu0 0.0
    %1191 = vmatprep.subr.mxu0 0.0
    %1192 = vmatpush2.msra.mxu0 0.0
    %1193 = vmatprep.subr.mxu0 0.0
    %1194 = vmatpush2.msra.mxu0 0.0
    %1195 = vmatprep.subr.mxu0 0.0
    %1196 = vmatpush2.msra.mxu0 0.0
    %1197 = vmatprep.subr.mxu0 0.0
    %1198 = vmatpush2.msra.mxu0 0.0
    %1199 = vmatprep.subr.mxu0 0.0
    %1200 = vmatpush2.msra.mxu0 0.0
    %1201 = vmatprep.subr.mxu0 0.0
    %1202 = vmatpush2.msra.mxu0 0.0
    %1203 = vmatprep.mubr.f32.mxu0 0.0
    %1204 = vmatmul.mubr.f32.gmra.mxu0 %v1137
    %v1205 = vpop.f32.mrf.mxu0
    %v1206 = vadd.f32 %v1132, %v1205
    %v1207 = vpop.f32.mrf.mxu0
    %1208 = vdwg.mxu0
    %v1209 = vtanh.pop %v1206
    %v1210 = vld [vmem:[%s12] sm:$0xff]
    %v1211 = vld [vmem:[%s12 + $0x8] sm:$0xff]
    %v1212 = vld [vmem:[%s12 + $0x10] sm:$0xff]
    %v1213 = vld [vmem:[%s12 + $0x18] sm:$0xff]
    %v1214 = vld [vmem:[#allocation2] sm:$0x1]
    %v1216 = vlaneseq
    %v1217 = vshrl.u32 %v1216, 7
    %v1218 = vsub.s32 0, %v1217
    %v1219 = vrot.slane %v1214, %v1218
    %v1222 = vsel %vm173, %v1209, 0
    %1224 = vmatprep.subr.mxu0 0.0
    %1225 = vmatpush1.msra.mxu0 0.0
    %1226 = vmatprep.subr.mxu0 0.0
    %1227 = vmatpush1.msra.mxu0 0.0
    %1228 = vmatprep.subr.mxu0 0.0
    %1229 = vmatpush1.msra.mxu0 0.0
    %1230 = vmatprep.subr.mxu0 0.0
    %1231 = vmatpush1.msra.mxu0 0.0
    %1232 = vmatprep.subr.mxu0 0.0
    %1233 = vmatpush1.msra.mxu0 0.0
    %1234 = vmatprep.subr.mxu0 0.0
    %1235 = vmatpush1.msra.mxu0 0.0
    %1236 = vmatprep.subr.mxu0 0.0
    %1237 = vmatpush1.msra.mxu0 0.0
    %1238 = vmatprep.subr.mxu0 0.0
    %1239 = vmatpush1.msra.mxu0 0.0
    %1240 = vmatprep.subr.mxu0 0.0
    %1241 = vmatpush1.msra.mxu0 0.0
    %1242 = vmatprep.subr.mxu0 0.0
    %1243 = vmatpush1.msra.mxu0 0.0
    %1244 = vmatprep.subr.mxu0 0.0
    %1245 = vmatpush1.msra.mxu0 0.0
    %1246 = vmatprep.subr.mxu0 0.0
    %1247 = vmatpush1.msra.mxu0 0.0
    %1248 = vmatprep.subr.mxu0 0.0
    %1249 = vmatpush1.msra.mxu0 %v1213
    %1250 = vmatprep.subr.mxu0 0.0
    %1251 = vmatpush1.msra.mxu0 %v1212
    %1252 = vmatprep.subr.mxu0 0.0
    %1253 = vmatpush1.msra.mxu0 %v1211
    %1254 = vmatprep.subr.mxu0 0.0
    %1255 = vmatpush1.msra.mxu0 %v1210
    %1256 = vmatprep.subr.mxu0 0.0
    %1257 = vmatpush2.msra.mxu0 0.0
    %1258 = vmatprep.subr.mxu0 0.0
    %1259 = vmatpush2.msra.mxu0 0.0
    %1260 = vmatprep.subr.mxu0 0.0
    %1261 = vmatpush2.msra.mxu0 0.0
    %1262 = vmatprep.subr.mxu0 0.0
    %1263 = vmatpush2.msra.mxu0 0.0
    %1264 = vmatprep.subr.mxu0 0.0
    %1265 = vmatpush2.msra.mxu0 0.0
    %1266 = vmatprep.subr.mxu0 0.0
    %1267 = vmatpush2.msra.mxu0 0.0
    %1268 = vmatprep.subr.mxu0 0.0
    %1269 = vmatpush2.msra.mxu0 0.0
    %1270 = vmatprep.subr.mxu0 0.0
    %1271 = vmatpush2.msra.mxu0 0.0
    %1272 = vmatprep.subr.mxu0 0.0
    %1273 = vmatpush2.msra.mxu0 0.0
    %1274 = vmatprep.subr.mxu0 0.0
    %1275 = vmatpush2.msra.mxu0 0.0
    %1276 = vmatprep.subr.mxu0 0.0
    %1277 = vmatpush2.msra.mxu0 0.0
    %1278 = vmatprep.subr.mxu0 0.0
    %1279 = vmatpush2.msra.mxu0 0.0
    %1280 = vmatprep.subr.mxu0 0.0
    %1281 = vmatpush2.msra.mxu0 0.0
    %1282 = vmatprep.subr.mxu0 0.0
    %1283 = vmatpush2.msra.mxu0 0.0
    %1284 = vmatprep.subr.mxu0 0.0
    %1285 = vmatpush2.msra.mxu0 0.0
    %1286 = vmatprep.subr.mxu0 0.0
    %1287 = vmatpush2.msra.mxu0 0.0
    %1288 = vmatprep.mubr.f32.mxu0 0.0
    %1289 = vmatmul.mubr.f32.gmra.mxu0 %v1222
    %v1290 = vpop.f32.mrf.mxu0
    %v1291 = vadd.f32 %v1219, %v1290
    %v1292 = vpop.f32.mrf.mxu0
    %1293 = vdwg.mxu0
    %v1294 = vadd.f32 %v1120, %v1291
    %vm1295 = vcmask 1024
    %1296 = vst.msk [vmem:[%s18] sm:$0x3] %vm1295, %v1294
    // Predicated region
    $region102: #{tpu_custom_call.1} parent=1 // pred_check
      _
    $region103: #{tpu_custom_call.1} parent=1 // pred_check_branch
      %1298 = sbr.rel (0) target = $region105
    $region104: #{tpu_custom_call.1} parent=1 // pred_region
      _
    $region105: #{tpu_custom_call.1} parent=1 // pred_fallthru
      _
    // Predicated region
    $region106: #{tpu_custom_call.1} parent=1 // pred_check
      _
    $region107: #{tpu_custom_call.1} parent=1 // pred_check_branch
      %1300 = sbr.rel (0) target = $region109
    $region108: #{tpu_custom_call.1} parent=1 // pred_region
      _
    $region109: #{tpu_custom_call.1} parent=1 // pred_fallthru
      _
    %1301 = vsyncpa [#allocation5], 1
    %1302 = vsyncpa [#allocation7], 1
    %1303 = vsyncpa [#allocation10], 1
    %1304 = vsyncpa [#allocation13], 1

</llo_original>
